<compile_context>
chip_gen: v7x
topology: tpu7x:2x2x1
jax: 0.10.0
libtpu: 0.0.40
codegen_flags: <defaults>
</compile_context>

<pallas_src>
import math
import numpy as np
import jax
import jax.numpy as jnp
from jax.experimental import pallas as pl
from jax.experimental.pallas import tpu as pltpu


# ---------------------------------------------------------------------------
# Kernel A: fused QKV projection (column-tiled bf16 MXU matmul) + RoPE.
# ---------------------------------------------------------------------------
def _qkv_rope_kernel(x_ref, w_ref, b_ref, cos_ref, sin_ref, o_ref):
    j = pl.program_id(2)                      # output-column tile index
    C_in = x_ref.shape[-1]
    hd = cos_ref.shape[-1]
    tn = o_ref.shape[-1]
    heads_per_tile = tn // hd
    n_rope_tiles = (2 * C_in) // tn           # column tiles covering Q and K

    acc = jnp.dot(x_ref[...], w_ref[...],
                  preferred_element_type=jnp.float32) + b_ref[...]   # (rows, tn) f32

    # Q / K column tiles: apply RoPE (rotate-half layout; sign folded in sin).
    @pl.when(j < n_rope_tiles)
    def _():
        cos = cos_ref[...]                    # (rows, hd) f32
        sin = sin_ref[...]                    # (rows, hd) f32
        pieces = []
        for h in range(heads_per_tile):       # per-head roll stays on the XLU
            t = acc[:, h * hd:(h + 1) * hd]
            rot = pltpu.roll(t, shift=hd // 2, axis=1)
            pieces.append(t * cos + rot * sin)
        rotated = pieces[0] if len(pieces) == 1 else jnp.concatenate(pieces, axis=1)
        o_ref[...] = rotated.astype(o_ref.dtype)      # single wide store

    # V column tiles: pass through.
    @pl.when(j >= n_rope_tiles)
    def _():
        o_ref[...] = acc.astype(o_ref.dtype)


# ---------------------------------------------------------------------------
# Kernel B: flash-style causal attention over lower-triangular tile pairs.
# ---------------------------------------------------------------------------
def _flash_attn_kernel(tab_ref, q_ref, k_ref, v_ref, o_ref, m_ref, l_ref, acc_ref):
    p = pl.program_id(2)
    qi = tab_ref[0, p]
    ki = tab_ref[1, p]
    bq = q_ref.shape[0]
    bkv = k_ref.shape[0]

    @pl.when(ki == 0)
    def _():
        m_ref[...] = jnp.full_like(m_ref, -jnp.inf)
        l_ref[...] = jnp.zeros_like(l_ref)
        acc_ref[...] = jnp.zeros_like(acc_ref)

    def step(masked):
        s = jax.lax.dot_general(q_ref[...], k_ref[...], (((1,), (1,)), ((), ())),
                                preferred_element_type=jnp.float32)   # (bq, bkv)
        if masked:
            # Diagonal tile only (bq == bkv): mask is grid-index independent.
            row = jax.lax.broadcasted_iota(jnp.int32, (bq, bkv), 0)
            col = jax.lax.broadcasted_iota(jnp.int32, (bq, bkv), 1)
            s = jnp.where(col <= row, s, -1e30)       # finite mask value (f32 safe)
        m_prev = m_ref[...]
        m_new = jnp.maximum(m_prev, jnp.max(s, axis=-1, keepdims=True))
        alpha = jnp.exp(m_prev - m_new)
        pr = jnp.exp(s - m_new)
        l_new = alpha * l_ref[...] + jnp.sum(pr, axis=-1, keepdims=True)
        acc_new = alpha * acc_ref[...] + jnp.dot(
            pr.astype(v_ref.dtype), v_ref[...], preferred_element_type=jnp.float32)
        return m_new, l_new, acc_new

    # Strictly-below-diagonal tiles: no mask work at all.
    @pl.when(ki < qi)
    def _():
        m_new, l_new, acc_new = step(masked=False)
        m_ref[...] = m_new
        l_ref[...] = l_new
        acc_ref[...] = acc_new

    # Diagonal tile: masked update + finalize (it is always the last kv tile
    # of this q tile in the lower-triangular enumeration).
    @pl.when(ki == qi)
    def _():
        _, l_new, acc_new = step(masked=True)
        inv_l = pl.reciprocal(l_new, approx=True)     # EUP, off the VPU path
        o_ref[...] = (acc_new * inv_l).astype(o_ref.dtype)


# ---------------------------------------------------------------------------
# Kernel C: output projection c_proj (column-tiled bf16 matmul + bias).
# ---------------------------------------------------------------------------
def _proj_kernel(y_ref, w_ref, b_ref, o_ref):
    out = jnp.dot(y_ref[...], w_ref[...], preferred_element_type=jnp.float32)
    o_ref[...] = (out + b_ref[...]).astype(o_ref.dtype)


def causal_self_attention(x, W_attn, b_attn, W_proj, b_proj, n_head):
    B, T, C = x.shape
    assert C % n_head == 0
    hd = C // n_head
    # TODO(synk): support head_dim not a multiple of 128 by packing several
    # heads into one 128-lane block inside the attention kernel.
    assert hd % 128 == 0, "this kernel requires head_dim to be a multiple of 128"
    assert T % 128 == 0, "this kernel requires T to be a multiple of 128"

    # ---- tile selection ------------------------------------------------------
    # Attention tiles: bq == bkv == 256 fills the 2x256x256 MXU on v6e/v7x.
    # TODO(synk): allow bq > bkv (generalized diagonal masking) to cut K/V
    # HBM re-reads further on very long sequences.
    blk = 256 if T % 256 == 0 else 128
    n_t = T // blk
    # Projection kernels use bigger row slabs (closer to HBM roofline).
    row_block = next(r for r in (512, 256, 128) if T % r == 0)
    n_row = T // row_block

    def _col_tile(n_units, unit, target=512):
        # largest multiple of `unit` that divides n_units*unit and is <= target
        k_max = max(1, min(n_units, target // unit))
        for k in range(k_max, 0, -1):
            if n_units % k == 0:
                return k * unit
        return unit

    tn_a = _col_tile(C // hd, hd)        # qkv weight column tile (multiple of hd)
    tn_c = _col_tile(C // 128, 128)      # c_proj weight column tile
    n_col_a = (3 * C) // tn_a
    n_col_c = C // tn_c

    # ---- VMEM limit: derive from the part, don't hard-code 64 MiB ------------
    try:
        vmem_cap = int(pltpu.get_tpu_info().vmem_capacity_bytes)
    except Exception:
        vmem_cap = 64 * 1024 * 1024      # conservative (v7x per-core) fallback
    vmem_limit = min(vmem_cap * 3 // 4, 100 * 1024 * 1024)

    # ---- wrapper-side weight preparation (done once) -------------------------
    # PyTorch fused feature order is [head][q|k|v][dim].  Reorder columns to
    # [Q | K | V] with heads contiguous; put each q/k head in rotate-half
    # (evens, odds) order so in-kernel RoPE is a single roll.  Fold 1/sqrt(hd)
    # into the q columns and bias.
    evens = np.arange(0, hd, 2)
    odds = np.arange(1, hd, 2)
    rh = np.concatenate([evens, odds])
    idx_q = np.concatenate([h * 3 * hd + rh for h in range(n_head)])
    idx_k = np.concatenate([h * 3 * hd + hd + rh for h in range(n_head)])
    idx_v = np.concatenate([h * 3 * hd + 2 * hd + np.arange(hd)
                            for h in range(n_head)])
    perm = jnp.asarray(np.concatenate([idx_q, idx_k, idx_v]))

    scale = 1.0 / math.sqrt(hd)
    Wqkv = jnp.transpose(W_attn)[:, perm]                      # (C, 3C)
    bqkv = b_attn[perm]
    Wqkv = Wqkv.at[:, :C].multiply(scale)
    bqkv = bqkv.at[:C].multiply(scale)
    Wqkv = Wqkv.astype(jnp.bfloat16)
    bqkv = bqkv.reshape(1, 3 * C).astype(jnp.float32)

    Wp = jnp.transpose(W_proj).astype(jnp.bfloat16)            # (C, C)
    bp = b_proj.reshape(1, C).astype(jnp.float32)

    # RoPE tables in rotate-half layout; the rotate-half sign is folded in sin.
    inv_freq = 1.0 / 10000.0 ** (jnp.arange(0, hd, 2, dtype=jnp.float32) / hd)
    freqs = jnp.arange(T, dtype=jnp.float32)[:, None] * inv_freq[None, :]
    cos_rh = jnp.concatenate([jnp.cos(freqs), jnp.cos(freqs)], axis=-1)   # (T, hd)
    sin_rh = jnp.concatenate([-jnp.sin(freqs), jnp.sin(freqs)], axis=-1)  # (T, hd)

    x_bf16 = x.astype(jnp.bfloat16)

    # ---- Kernel A: qkv projection + RoPE -------------------------------------
    qkv = pl.pallas_call(
        _qkv_rope_kernel,
        out_shape=jax.ShapeDtypeStruct((B, T, 3 * C), jnp.bfloat16),
        grid_spec=pltpu.PrefetchScalarGridSpec(
            num_scalar_prefetch=0,
            grid=(B, n_row, n_col_a),
            in_specs=[
                pl.BlockSpec((None, row_block, C), lambda b, i, j: (b, i, 0)),  # x
                pl.BlockSpec((C, tn_a), lambda b, i, j: (0, j)),                # Wqkv
                pl.BlockSpec((1, tn_a), lambda b, i, j: (0, j)),                # bqkv
                pl.BlockSpec((row_block, hd), lambda b, i, j: (i, 0)),          # cos
                pl.BlockSpec((row_block, hd), lambda b, i, j: (i, 0)),          # sin
            ],
            out_specs=pl.BlockSpec((None, row_block, tn_a),
                                   lambda b, i, j: (b, i, j)),
        ),
        compiler_params=pltpu.CompilerParams(
            dimension_semantics=("parallel", "parallel", "parallel"),
            vmem_limit_bytes=vmem_limit),
    )(x_bf16, Wqkv, bqkv, cos_rh, sin_rh)

    # ---- Kernel B: flash causal attention (lower-triangular tile pairs) ------
    # qkv columns: [0,C) = Q (per-head hd blocks), [C,2C) = K, [2C,3C) = V.
    pairs = np.array([(qi, ki) for qi in range(n_t) for ki in range(qi + 1)],
                     dtype=np.int32).T                         # (2, n_pairs)
    n_pairs = pairs.shape[1]
    pair_tab = jnp.asarray(pairs)

    y = pl.pallas_call(
        _flash_attn_kernel,
        out_shape=jax.ShapeDtypeStruct((B, T, C), jnp.bfloat16),
        grid_spec=pltpu.PrefetchScalarGridSpec(
            num_scalar_prefetch=1,
            grid=(B, n_head, n_pairs),
            in_specs=[
                pl.BlockSpec((None, blk, hd),
                             lambda b, h, p, tab: (b, tab[0, p], h)),              # q
                pl.BlockSpec((None, blk, hd),
                             lambda b, h, p, tab: (b, tab[1, p], n_head + h)),     # k
                pl.BlockSpec((None, blk, hd),
                             lambda b, h, p, tab: (b, tab[1, p], 2 * n_head + h)), # v
            ],
            out_specs=pl.BlockSpec((None, blk, hd),
                                   lambda b, h, p, tab: (b, tab[0, p], h)),
            scratch_shapes=[
                pltpu.VMEM((blk, 1), jnp.float32),     # running max m
                pltpu.VMEM((blk, 1), jnp.float32),     # running sum l
                pltpu.VMEM((blk, hd), jnp.float32),    # accumulator
            ],
        ),
        compiler_params=pltpu.CompilerParams(
            dimension_semantics=("parallel", "parallel", "arbitrary"),
            vmem_limit_bytes=vmem_limit),
    )(pair_tab, qkv, qkv, qkv)

    # ---- Kernel C: output projection ------------------------------------------
    out = pl.pallas_call(
        _proj_kernel,
        out_shape=jax.ShapeDtypeStruct((B, T, C), x.dtype),
        grid_spec=pltpu.PrefetchScalarGridSpec(
            num_scalar_prefetch=0,
            grid=(B, n_row, n_col_c),
            in_specs=[
                pl.BlockSpec((None, row_block, C), lambda b, i, j: (b, i, 0)),  # y
                pl.BlockSpec((C, tn_c), lambda b, i, j: (0, j)),                # Wp
                pl.BlockSpec((1, tn_c), lambda b, i, j: (0, j)),                # bp
            ],
            out_specs=pl.BlockSpec((None, row_block, tn_c),
                                   lambda b, i, j: (b, i, j)),
        ),
        compiler_params=pltpu.CompilerParams(
            dimension_semantics=("parallel", "parallel", "parallel"),
            vmem_limit_bytes=vmem_limit),
    )(y, Wp, bp)
    return out


def reference(x, W_attn, b_attn, W_proj, b_proj, n_head):
    """Pure-JAX f32 mirror of the PyTorch forward (abs_emb=False, no flash, p=0)."""
    B, T, C = x.shape
    hd = C // n_head
    qkv = x @ W_attn.T + b_attn
    qkv = jnp.transpose(qkv.reshape(B, T, n_head, 3, hd), (3, 0, 2, 1, 4))
    q, k, v = qkv[0], qkv[1], qkv[2]
    inv_freq = 1.0 / 10000.0 ** (jnp.arange(0, hd, 2, dtype=jnp.float32) / hd)
    freqs = jnp.arange(T, dtype=jnp.float32)[:, None] * inv_freq[None, :]
    cos, sin = jnp.cos(freqs), jnp.sin(freqs)

    def rope(t):
        even = t[..., ::2] * cos - t[..., 1::2] * sin
        odd = t[..., ::2] * sin + t[..., 1::2] * cos
        return jnp.stack([even, odd], axis=-1).reshape(t.shape)

    q, k = rope(q), rope(k)
    att = q @ jnp.swapaxes(k, -1, -2) / math.sqrt(hd)
    mask = jnp.tril(jnp.ones((T, T), dtype=jnp.float32))
    att = jnp.where(mask == 0, -jnp.inf, att)
    att = jax.nn.softmax(att, axis=-1)
    y = att @ v
    y = jnp.swapaxes(y, 1, 2).reshape(B, T, C)
    return y @ W_proj.T + b_proj


if __name__ == "__main__":
    # head_dim = 128 (lane-aligned); T = 512 with 256x256 attention tiles gives
    # 2 q tiles and 3 lower-triangular tile pairs, exercising the init /
    # accumulate / masked-diagonal-finalize paths and the triangular grid.
    B, T, C, n_head = 2, 512, 256, 2

    key = jax.random.PRNGKey(0)
    kx, k1, k2, k3, k4 = jax.random.split(key, 5)
    x = jax.random.normal(kx, (B, T, C), dtype=jnp.float32)
    W_attn = 0.05 * jax.random.normal(k1, (3 * C, C), dtype=jnp.float32)
    b_attn = 0.05 * jax.random.normal(k2, (3 * C,), dtype=jnp.float32)
    W_proj = 0.05 * jax.random.normal(k3, (C, C), dtype=jnp.float32)
    b_proj = 0.05 * jax.random.normal(k4, (C,), dtype=jnp.float32)

    out = causal_self_attention(x, W_attn, b_attn, W_proj, b_proj, n_head)
    out = jax.block_until_ready(out)

    ref = reference(x, W_attn, b_attn, W_proj, b_proj, n_head)
    err = float(jnp.max(jnp.abs(out - ref)))
    ref_scale = float(jnp.max(jnp.abs(ref)))
    assert err <= 0.03 * max(ref_scale, 1.0), \
        f"max abs error {err} (ref scale {ref_scale})"
    print("KERNEL_OK")
</pallas_src>

<mosaic_0001>
module attributes {stable_mosaic.version = 11 : i64} {
  func.func @_qkv_rope_kernel(%arg0: i32, %arg1: i32, %arg2: i32, %arg3: memref<1x512x256xbf16, #tpu.memory_space<vmem>>, %arg4: memref<256x256xbf16, #tpu.memory_space<vmem>>, %arg5: memref<1x256xf32, #tpu.memory_space<vmem>>, %arg6: memref<512x128xf32, #tpu.memory_space<vmem>>, %arg7: memref<512x128xf32, #tpu.memory_space<vmem>>, %arg8: memref<1x512x256xbf16, #tpu.memory_space<vmem>>) attributes {dimension_semantics = [#tpu.dimension_semantics<parallel>, #tpu.dimension_semantics<parallel>, #tpu.dimension_semantics<parallel>], iteration_bounds = array<i64: 2, 1, 3>, scalar_prefetch = 0 : i64, scratch_operands = 0 : i64, tpu.core_type = #tpu.core_type<tc>, window_params = [{transform_indices = @transform_0, window_bounds = array<i64: 1, 512, 256>}, {transform_indices = @transform_1, window_bounds = array<i64: 256, 256>}, {transform_indices = @transform_2, window_bounds = array<i64: 1, 256>}, {transform_indices = @transform_3, window_bounds = array<i64: 512, 128>}, {transform_indices = @transform_4, window_bounds = array<i64: 512, 128>}, {transform_indices = @transform_5, window_bounds = array<i64: 1, 512, 256>}]} {
    %c0 = arith.constant 0 : index
    %c0_0 = arith.constant 0 : index
    %c0_1 = arith.constant 0 : index
    %0 = vector.load %arg3[%c0, %c0_0, %c0_1] : memref<1x512x256xbf16, #tpu.memory_space<vmem>>, vector<1x512x256xbf16>
    %1 = vector.shape_cast %0 : vector<1x512x256xbf16> to vector<512x256xbf16>
    %c0_2 = arith.constant 0 : index
    %c0_3 = arith.constant 0 : index
    %2 = vector.load %arg4[%c0_2, %c0_3] : memref<256x256xbf16, #tpu.memory_space<vmem>>, vector<256x256xbf16>
    %cst = arith.constant dense<0.000000e+00> : vector<512x256xf32>
    %3 = tpu.matmul %1, %2, %cst {dimension_numbers = #tpu.dot_dimension_numbers<[1], [0], [0], [1], [0, 0, 1, 1], [], []>} : vector<512x256xbf16>, vector<256x256xbf16>, vector<512x256xf32> -> vector<512x256xf32>
    %c0_4 = arith.constant 0 : index
    %c0_5 = arith.constant 0 : index
    %4 = vector.load %arg5[%c0_4, %c0_5] : memref<1x256xf32, #tpu.memory_space<vmem>>, vector<1x256xf32>
    %5 = vector.broadcast %4 : vector<1x256xf32> to vector<512x256xf32>
    %6 = arith.addf %3, %5 : vector<512x256xf32>
    %c2_i32 = arith.constant 2 : i32
    %7 = arith.cmpi slt, %arg2, %c2_i32 : i32
    %8 = arith.extui %7 : i1 to i32
    %c0_i32 = arith.constant 0 : i32
    %9 = arith.cmpi ne, %8, %c0_i32 : i32
    scf.if %9 {
      %c0_8 = arith.constant 0 : index
      %c0_9 = arith.constant 0 : index
      %13 = vector.load %arg6[%c0_8, %c0_9] : memref<512x128xf32, #tpu.memory_space<vmem>>, vector<512x128xf32>
      %c0_10 = arith.constant 0 : index
      %c0_11 = arith.constant 0 : index
      %14 = vector.load %arg7[%c0_10, %c0_11] : memref<512x128xf32, #tpu.memory_space<vmem>>, vector<512x128xf32>
      %15 = vector.extract_strided_slice %6 {offsets = [0, 0], sizes = [512, 128], strides = [1, 1]} : vector<512x256xf32> to vector<512x128xf32>
      %c64_i32 = arith.constant 64 : i32
      %16 = tpu.dynamic_rotate %15 by %c64_i32 dim 1 : vector<512x128xf32>, i32 -> vector<512x128xf32>
      %17 = arith.mulf %15, %13 : vector<512x128xf32>
      %18 = arith.mulf %16, %14 : vector<512x128xf32>
      %19 = arith.addf %17, %18 : vector<512x128xf32>
      %20 = vector.extract_strided_slice %6 {offsets = [0, 128], sizes = [512, 128], strides = [1, 1]} : vector<512x256xf32> to vector<512x128xf32>
      %c64_i32_12 = arith.constant 64 : i32
      %21 = tpu.dynamic_rotate %20 by %c64_i32_12 dim 1 : vector<512x128xf32>, i32 -> vector<512x128xf32>
      %22 = arith.mulf %20, %13 : vector<512x128xf32>
      %23 = arith.mulf %21, %14 : vector<512x128xf32>
      %24 = arith.addf %22, %23 : vector<512x128xf32>
      %25 = tpu.concatenate %19, %24 in 1 : vector<512x128xf32>, vector<512x128xf32> -> vector<512x256xf32>
      %26 = arith.truncf %25 : vector<512x256xf32> to vector<512x256xbf16>
      %c0_13 = arith.constant 0 : index
      %c0_14 = arith.constant 0 : index
      %c0_15 = arith.constant 0 : index
      %27 = vector.load %arg8[%c0_13, %c0_14, %c0_15] : memref<1x512x256xbf16, #tpu.memory_space<vmem>>, vector<1x512x256xbf16>
      %28 = vector.shape_cast %27 : vector<1x512x256xbf16> to vector<512x256xbf16>
      %29 = vector.shape_cast %26 : vector<512x256xbf16> to vector<1x512x256xbf16>
      tpu.vector_store %arg8[%c0_13, %c0_14, %c0_15], %29 {strides = array<i32>} : memref<1x512x256xbf16, #tpu.memory_space<vmem>>, vector<1x512x256xbf16>,
    } else {
    }
    %c2_i32_6 = arith.constant 2 : i32
    %10 = arith.cmpi sge, %arg2, %c2_i32_6 : i32
    %11 = arith.extui %10 : i1 to i32
    %c0_i32_7 = arith.constant 0 : i32
    %12 = arith.cmpi ne, %11, %c0_i32_7 : i32
    scf.if %12 {
      %13 = arith.truncf %6 : vector<512x256xf32> to vector<512x256xbf16>
      %c0_8 = arith.constant 0 : index
      %c0_9 = arith.constant 0 : index
      %c0_10 = arith.constant 0 : index
      %14 = vector.load %arg8[%c0_8, %c0_9, %c0_10] : memref<1x512x256xbf16, #tpu.memory_space<vmem>>, vector<1x512x256xbf16>
      %15 = vector.shape_cast %14 : vector<1x512x256xbf16> to vector<512x256xbf16>
      %16 = vector.shape_cast %13 : vector<512x256xbf16> to vector<1x512x256xbf16>
      tpu.vector_store %arg8[%c0_8, %c0_9, %c0_10], %16 {strides = array<i32>} : memref<1x512x256xbf16, #tpu.memory_space<vmem>>, vector<1x512x256xbf16>,
    } else {
    }
    return
  }
  func.func @transform_0(%arg0: i32, %arg1: i32, %arg2: i32) -> (i32, i32, i32) {
    %c0_i32 = arith.constant 0 : i32
    %c0_i32_0 = arith.constant 0 : i32
    return %arg0, %arg1, %c0_i32 : i32, i32, i32
  }
  func.func @transform_1(%arg0: i32, %arg1: i32, %arg2: i32) -> (i32, i32) {
    %c0_i32 = arith.constant 0 : i32
    %c0_i32_0 = arith.constant 0 : i32
    return %c0_i32, %arg2 : i32, i32
  }
  func.func @transform_2(%arg0: i32, %arg1: i32, %arg2: i32) -> (i32, i32) {
    %c0_i32 = arith.constant 0 : i32
    %c0_i32_0 = arith.constant 0 : i32
    return %c0_i32, %arg2 : i32, i32
  }
  func.func @transform_3(%arg0: i32, %arg1: i32, %arg2: i32) -> (i32, i32) {
    %c0_i32 = arith.constant 0 : i32
    %c0_i32_0 = arith.constant 0 : i32
    return %arg1, %c0_i32 : i32, i32
  }
  func.func @transform_4(%arg0: i32, %arg1: i32, %arg2: i32) -> (i32, i32) {
    %c0_i32 = arith.constant 0 : i32
    %c0_i32_0 = arith.constant 0 : i32
    return %arg1, %c0_i32 : i32, i32
  }
  func.func @transform_5(%arg0: i32, %arg1: i32, %arg2: i32) -> (i32, i32, i32) {
    %c0_i32 = arith.constant 0 : i32
    return %arg0, %arg1, %arg2 : i32, i32, i32
  }
}

</mosaic_0001>

<llo_original>
// kernel: tpu_custom_call.1
$region0: #{tpu_custom_call.1}
  #allocation0 [shape = 'u32[]', space=smem, size = 0x4, offset = 0x4, fixed_abs, tag = 'smem constant byte address 0x4 - core index']
  #allocation1 [shape = 'u32[144,128]{1,0:T(1,128)}', space=vmem, size = 0x12000, scoped, tag = 'internal scratch']
  %s0 = inlined_call_operand.hbm [shape: bf16[2,512,256], index: 0, kind: input, shape index: {}]
  %s1 = inlined_call_operand.hbm [shape: bf16[256,768], index: 1, kind: input, shape index: {}]
  %s2 = inlined_call_operand.hbm [shape: f32[1,768], index: 2, kind: input, shape index: {}]
  %s3 = inlined_call_operand.hbm [shape: f32[512,128], index: 3, kind: input, shape index: {}]
  %s4 = inlined_call_operand.hbm [shape: f32[512,128], index: 4, kind: input, shape index: {}]
  %s5 = inlined_call_operand.hbm [shape: bf16[2,512,768], index: 5, kind: output, shape index: {}]
  %s6 = sld [smem:[#allocation0]]
  $region81: #{tpu_custom_call.1} parent=0
    _
  %s8 = ssub.s32 1, %s6
  %s9 = scalar_select 0, %s8, %s6
  $region1: #{tpu_custom_call.1} parent=0
    #allocation2 [shape = 'u8[524288]{0}', space=vmem, size = 0x80000, scoped, tag = 'input window, operand 0']
    #allocation3 [shape = 's32[2]{0}', space=sflag, size = 0x8, scoped, tag = 'scoped memory for tpu_custom_call.1']
    #allocation4 [shape = 's32[2]{0}', space=sflag, size = 0x8, scoped, tag = 'scoped memory for tpu_custom_call.1']
    #allocation5 [shape = 'u8[262144]{0}', space=vmem, size = 0x40000, scoped, tag = 'input window, operand 1']
    #allocation6 [shape = 's32[2]{0}', space=sflag, size = 0x8, scoped, tag = 'scoped memory for tpu_custom_call.1']
    #allocation7 [shape = 'u8[2048]{0}', space=vmem, size = 0x800, scoped, tag = 'input window, operand 2']
    #allocation8 [shape = 'u8[262144]{0}', space=vmem, size = 0x40000, scoped, tag = 'input window, operand 3, single buffered']
    #allocation9 [shape = 's32[1]{0}', space=sflag, size = 0x4, scoped, tag = 'scoped memory for tpu_custom_call.1']
    #allocation10 [shape = 'u8[262144]{0}', space=vmem, size = 0x40000, scoped, tag = 'input window, operand 4, single buffered']
    #allocation11 [shape = 'u8[524288]{0}', space=vmem, size = 0x80000, scoped, tag = 'output window, operand 0']
    %10 = vsyncpa [#allocation3], 0
    %s11 = scalar_lea.sflag [#allocation3], 1
    %12 = vsyncpa %s11, 0
    %13 = vsyncpa [#allocation6], 0
    %s14 = scalar_lea.sflag [#allocation6], 1
    %15 = vsyncpa %s14, 0
    %16 = vsyncpa [#allocation9], 0
    %17 = vsyncpa [#allocation4], 0
    %s18 = scalar_lea.sflag [#allocation4], 1
    %19 = vsyncpa %s18, 0
    loop: start=0, step=1, limit=8
    $region2: #{tpu_custom_call.1} parent=1 // loop_pre_header
      _
    $region3: #{tpu_custom_call.1} parent=1 // loop_header
      %s21 = sphi 0, %s25
      %p22 = scmp.ge.s32.totalorder %s21, 8
      %s28 = sphi 0, %s47
      %s29 = sphi 0, %s43
      %s30 = sphi 0, %s39
      %s31 = sphi 0, %s28
      %s32 = sphi 0, %s29
      %s33 = sphi 0, %s30
      %s34 = sphi 0, %s31
      %s35 = sphi 0, %s32
      %s36 = sphi 0, %s33
      %s52 = sphi 0, %s54
      %s55 = sphi 0, %s52
      %s56 = sphi 0, %s55
      %s72 = sphi 0, %s56
      %s78 = sphi 0, %s80
      %s81 = sphi 0, %s78
      %s82 = sphi 0, %s81
      %s98 = sphi 0, %s82
      %s104 = sphi 0, %s106
      %s107 = sphi 0, %s104
      %s108 = sphi 0, %s107
      %s124 = sphi 0, %s108
      %s130 = sphi 0, %s132
      %s133 = sphi 0, %s130
      %s134 = sphi 0, %s133
      %s150 = sphi 0, %s134
      %s156 = sphi 0, %s158
      %s159 = sphi 0, %s156
      %s160 = sphi 0, %s159
      %s176 = sphi 0, %s160
      %s186 = sphi 0, %s188
      %s189 = sphi 0, %s186
      %s190 = sphi 0, %s189
      %s206 = sphi 0, %s190
    $region4: #{tpu_custom_call.1} parent=1 // loop_header_branch
      %24 = sbr.rel (%p22) target = $region8
    $region5: #{tpu_custom_call.1} parent=1 // loop_body
      %s26 = ssub.s32 %s21, 1
      %s27 = ssub.s32 %s21, 2
      %s37 = sadd.s32 1, %s30
      %p38 = scmp.ge.s32.totalorder %s37, 3
      %s39 = scalar_select %p38, 0, %s37
      %s40 = sadd.s32 1, %s29
      %s41 = scalar_select %p38, %s40, %s29
      %p42 = scmp.ge.s32.totalorder %s41, 1
      %s43 = scalar_select %p42, 0, %s41
      %s44 = sadd.s32 1, %s28
      %s45 = scalar_select %p42, %s44, %s28
      %p46 = scmp.ge.s32.totalorder %s45, 2
      %s47 = scalar_select %p46, 0, %s45
      %s48 = ssub.s32 %s28, %s47
      %s49 = ssub.s32 %s29, %s43
      %s50 = sor.u32 %s48, %s49
      %p51 = scmp.eq.s32.totalorder %s50, 0
      %s53 = sadd.s32 %s52, 1
      %s54 = scalar_select %p51, %s52, %s53
      %p57 = pneg %p51
      %p58 = scmp.eq.s32.totalorder %s21, 5
      %p59 = por %p57, %p58
      %p60 = scmp.ne.s32.totalorder %s52, %s55
      %p61 = scmp.eq.s32.totalorder %s21, 0
      %p62 = por %p60, %p61
      %p63 = scmp.ne.s32.totalorder %s52, %s55
      %p64 = scmp.eq.s32.totalorder %s26, 5
      %p65 = por %p63, %p64
      %p66 = scmp.ne.s32.totalorder %s55, %s56
      %p67 = scmp.eq.s32.totalorder %s26, 0
      %p68 = por %p66, %p67
      %p69 = scmp.ne.s32.totalorder %s55, %s56
      %p70 = scmp.eq.s32.totalorder %s27, 5
      %p71 = por %p69, %p70
      %p73 = scmp.ne.s32.totalorder %s56, %s72
      %p74 = scmp.eq.s32.totalorder %s27, 0
      %p75 = por %p73, %p74
      %s76 = ssub.s32 %s30, %s39
      %p77 = scmp.eq.s32.totalorder %s76, 0
      %s79 = sadd.s32 %s78, 1
      %s80 = scalar_select %p77, %s78, %s79
      %p83 = pneg %p77
      %p84 = scmp.eq.s32.totalorder %s21, 5
      %p85 = por %p83, %p84
      %p86 = scmp.ne.s32.totalorder %s78, %s81
      %p87 = scmp.eq.s32.totalorder %s21, 0
      %p88 = por %p86, %p87
      %p89 = scmp.ne.s32.totalorder %s78, %s81
      %p90 = scmp.eq.s32.totalorder %s26, 5
      %p91 = por %p89, %p90
      %p92 = scmp.ne.s32.totalorder %s81, %s82
      %p93 = scmp.eq.s32.totalorder %s26, 0
      %p94 = por %p92, %p93
      %p95 = scmp.ne.s32.totalorder %s81, %s82
      %p96 = scmp.eq.s32.totalorder %s27, 5
      %p97 = por %p95, %p96
      %p99 = scmp.ne.s32.totalorder %s82, %s98
      %p100 = scmp.eq.s32.totalorder %s27, 0
      %p101 = por %p99, %p100
      %s102 = ssub.s32 %s30, %s39
      %p103 = scmp.eq.s32.totalorder %s102, 0
      %s105 = sadd.s32 %s104, 1
      %s106 = scalar_select %p103, %s104, %s105
      %p109 = pneg %p103
      %p110 = scmp.eq.s32.totalorder %s21, 5
      %p111 = por %p109, %p110
      %p112 = scmp.ne.s32.totalorder %s104, %s107
      %p113 = scmp.eq.s32.totalorder %s21, 0
      %p114 = por %p112, %p113
      %p115 = scmp.ne.s32.totalorder %s104, %s107
      %p116 = scmp.eq.s32.totalorder %s26, 5
      %p117 = por %p115, %p116
      %p118 = scmp.ne.s32.totalorder %s107, %s108
      %p119 = scmp.eq.s32.totalorder %s26, 0
      %p120 = por %p118, %p119
      %p121 = scmp.ne.s32.totalorder %s107, %s108
      %p122 = scmp.eq.s32.totalorder %s27, 5
      %p123 = por %p121, %p122
      %p125 = scmp.ne.s32.totalorder %s108, %s124
      %p126 = scmp.eq.s32.totalorder %s27, 0
      %p127 = por %p125, %p126
      %s128 = ssub.s32 %s29, %s43
      %p129 = scmp.eq.s32.totalorder %s128, 0
      %s131 = sadd.s32 %s130, 1
      %s132 = scalar_select %p129, %s130, %s131
      %p135 = pneg %p129
      %p136 = scmp.eq.s32.totalorder %s21, 5
      %p137 = por %p135, %p136
      %p138 = scmp.ne.s32.totalorder %s130, %s133
      %p139 = scmp.eq.s32.totalorder %s21, 0
      %p140 = por %p138, %p139
      %p141 = scmp.ne.s32.totalorder %s130, %s133
      %p142 = scmp.eq.s32.totalorder %s26, 5
      %p143 = por %p141, %p142
      %p144 = scmp.ne.s32.totalorder %s133, %s134
      %p145 = scmp.eq.s32.totalorder %s26, 0
      %p146 = por %p144, %p145
      %p147 = scmp.ne.s32.totalorder %s133, %s134
      %p148 = scmp.eq.s32.totalorder %s27, 5
      %p149 = por %p147, %p148
      %p151 = scmp.ne.s32.totalorder %s134, %s150
      %p152 = scmp.eq.s32.totalorder %s27, 0
      %p153 = por %p151, %p152
      %s154 = ssub.s32 %s29, %s43
      %p155 = scmp.eq.s32.totalorder %s154, 0
      %s157 = sadd.s32 %s156, 1
      %s158 = scalar_select %p155, %s156, %s157
      %p161 = pneg %p155
      %p162 = scmp.eq.s32.totalorder %s21, 5
      %p163 = por %p161, %p162
      %p164 = scmp.ne.s32.totalorder %s156, %s159
      %p165 = scmp.eq.s32.totalorder %s21, 0
      %p166 = por %p164, %p165
      %p167 = scmp.ne.s32.totalorder %s156, %s159
      %p168 = scmp.eq.s32.totalorder %s26, 5
      %p169 = por %p167, %p168
      %p170 = scmp.ne.s32.totalorder %s159, %s160
      %p171 = scmp.eq.s32.totalorder %s26, 0
      %p172 = por %p170, %p171
      %p173 = scmp.ne.s32.totalorder %s159, %s160
      %p174 = scmp.eq.s32.totalorder %s27, 5
      %p175 = por %p173, %p174
      %p177 = scmp.ne.s32.totalorder %s160, %s176
      %p178 = scmp.eq.s32.totalorder %s27, 0
      %p179 = por %p177, %p178
      %s180 = ssub.s32 %s28, %s47
      %s181 = ssub.s32 %s29, %s43
      %s182 = sor.u32 %s180, %s181
      %s183 = ssub.s32 %s30, %s39
      %s184 = sor.u32 %s182, %s183
      %p185 = scmp.eq.s32.totalorder %s184, 0
      %s187 = sadd.s32 %s186, 1
      %s188 = scalar_select %p185, %s186, %s187
      %p191 = pneg %p185
      %p192 = scmp.eq.s32.totalorder %s21, 5
      %p193 = por %p191, %p192
      %p194 = scmp.ne.s32.totalorder %s186, %s189
      %p195 = scmp.eq.s32.totalorder %s21, 0
      %p196 = por %p194, %p195
      %p197 = scmp.ne.s32.totalorder %s186, %s189
      %p198 = scmp.eq.s32.totalorder %s26, 5
      %p199 = por %p197, %p198
      %p200 = scmp.ne.s32.totalorder %s189, %s190
      %p201 = scmp.eq.s32.totalorder %s26, 0
      %p202 = por %p200, %p201
      %p203 = scmp.ne.s32.totalorder %s189, %s190
      %p204 = scmp.eq.s32.totalorder %s27, 5
      %p205 = por %p203, %p204
      %p207 = scmp.ne.s32.totalorder %s190, %s206
      %p208 = scmp.eq.s32.totalorder %s27, 0
      %p209 = por %p207, %p208
      %p210 = scmp.le.s32.totalorder 1, %s21
      %p211 = scmp.lt.s32.totalorder %s21, 7
      %p212 = pnand %p210, %p211
      %p213 = pneg %p212
      // Predicated region
      $region9: #{tpu_custom_call.1} parent=5 // pred_check
        _
      $region10: #{tpu_custom_call.1} parent=5 // pred_check_branch
        %215 = sbr.rel (%p212) target = $region12
      $region11: #{tpu_custom_call.1} parent=5 // pred_region
        %s216 = ssub.s32 %s21, 1
        // Predicated region
        $region13: #{tpu_custom_call.1} parent=11 // pred_check
          %p217 = pneg %p146
        $region14: #{tpu_custom_call.1} parent=11 // pred_check_branch
          %219 = sbr.rel (%p217) target = $region16
        $region15: #{tpu_custom_call.1} parent=11 // pred_region
          %s220 = smul.u32 64, %s32
          %s222 = ssub.s32 8192, 8192
          %223 = vsyncadd [#allocation9], %s222
          %s224 = smul.addr %s220, 128
          %s225 = scalar_lea.hbm %s3, %s224
          %s226 = sshll.u32 [#allocation8], 4
          %s227 = int_to_ptr.vmem [resolvable:$true] %s226
          %232 = dma.hbm_to_vmem [thread:$0]  %s225, 8192, %s227, [#allocation9], 128, 128, 8
        $region16: #{tpu_custom_call.1} parent=11 // pred_fallthru
          _
        // Predicated region
        $region17: #{tpu_custom_call.1} parent=11 // pred_check
          %p233 = pneg %p172
        $region18: #{tpu_custom_call.1} parent=11 // pred_check_branch
          %235 = sbr.rel (%p233) target = $region20
        $region19: #{tpu_custom_call.1} parent=11 // pred_region
          %s236 = smul.u32 64, %s32
          %s238 = ssub.s32 8192, 8192
          %239 = vsyncadd [#allocation9], %s238
          %s240 = smul.addr %s236, 128
          %s241 = scalar_lea.hbm %s4, %s240
          %s242 = sshll.u32 [#allocation10], 4
          %s243 = int_to_ptr.vmem [resolvable:$true] %s242
          %248 = dma.hbm_to_vmem [thread:$0]  %s241, 8192, %s243, [#allocation9], 128, 128, 8
        $region20: #{tpu_custom_call.1} parent=11 // pred_fallthru
          _
      $region12: #{tpu_custom_call.1} parent=5 // pred_fallthru
        _
      %p249 = scmp.lt.s32.totalorder %s21, 6
      // Predicated region
      $region21: #{tpu_custom_call.1} parent=5 // pred_check
        %p250 = pneg %p249
      $region22: #{tpu_custom_call.1} parent=5 // pred_check_branch
        %252 = sbr.rel (%p250) target = $region24
      $region23: #{tpu_custom_call.1} parent=5 // pred_region
        // Predicated region
        $region25: #{tpu_custom_call.1} parent=23 // pred_check
          %p253 = pneg %p62
        $region26: #{tpu_custom_call.1} parent=23 // pred_check_branch
          %255 = sbr.rel (%p253) target = $region28
        $region27: #{tpu_custom_call.1} parent=23 // pred_region
          %s256 = sand.u32 %s52, 1
          %s257 = scalar_lea.sflag [#allocation3], %s256
          %s258 = sand.u32 %s52, 1
          %s259 = smul.addr %s258, 512
          %s260 = scalar_lea.vmem [#allocation2], %s259
          %s261 = smul.u32 64, %s29
          %s263 = ssub.s32 8192, 8192
          %264 = vsyncadd %s257, %s263
          %s265 = smul.addr %s261, 2
          %s266 = smul.addr %s28, 128
          %s267 = sadd.s32 %s265, %s266
          %s268 = smul.addr %s267, 64
          %s269 = scalar_lea.hbm %s0, %s268
          %s270 = sshll.u32 %s260, 4
          %s271 = int_to_ptr.vmem [resolvable:$true] %s270
          %276 = dma.hbm_to_vmem [thread:$0]  %s269, 8192, %s271, %s257, 128, 128, 8
        $region28: #{tpu_custom_call.1} parent=23 // pred_fallthru
          _
        // Predicated region
        $region29: #{tpu_custom_call.1} parent=23 // pred_check
          %p277 = pneg %p88
        $region30: #{tpu_custom_call.1} parent=23 // pred_check_branch
          %279 = sbr.rel (%p277) target = $region32
        $region31: #{tpu_custom_call.1} parent=23 // pred_region
          %s280 = sand.u32 %s21, 1
          %s281 = scalar_lea.sflag [#allocation6], %s280
          %s282 = sand.u32 %s78, 1
          %s283 = smul.addr %s282, 256
          %s284 = scalar_lea.vmem [#allocation5], %s283
          %s285 = smul.u32 2, %s30
          %s287 = ssub.s32 4096, 4096
          %288 = vsyncadd %s281, %s287
          %s289 = smul.addr %s285, 64
          %s290 = scalar_lea.hbm %s1, %s289
          %s291 = sshll.u32 %s284, 4
          %s292 = int_to_ptr.vmem [resolvable:$true] %s291
          %297 = dma.hbm_to_vmem [thread:$0]  %s290, 4096, %s292, %s281, 384, 128, 8
        $region32: #{tpu_custom_call.1} parent=23 // pred_fallthru
          _
        // Predicated region
        $region33: #{tpu_custom_call.1} parent=23 // pred_check
          %p298 = pneg %p114
        $region34: #{tpu_custom_call.1} parent=23 // pred_check_branch
          %300 = sbr.rel (%p298) target = $region36
        $region35: #{tpu_custom_call.1} parent=23 // pred_region
          %s301 = sand.u32 %s21, 1
          %s302 = scalar_lea.sflag [#allocation6], %s301
          %s303 = sand.u32 %s104, 1
          %s304 = smul.addr %s303, 2
          %s305 = scalar_lea.vmem [#allocation7], %s304
          %s306 = smul.u32 2, %s30
          %s308 = ssub.s32 32, 32
          %309 = vsyncadd %s302, %s308
          %s310 = smul.addr %s306, 16
          %s311 = scalar_lea.hbm %s2, %s310
          %s313 = sshll.u32 %s305, 4
          %s314 = int_to_ptr.vmem [resolvable:$true] %s313
          %316 = dma.hbm_to_vmem [thread:$0]  %s311, 32, %s314, %s302
        $region36: #{tpu_custom_call.1} parent=23 // pred_fallthru
          _
      $region24: #{tpu_custom_call.1} parent=5 // pred_fallthru
        _
      %p317 = scmp.le.s32.totalorder 1, %s21
      %p318 = scmp.lt.s32.totalorder %s21, 7
      %p319 = pnand %p317, %p318
      %p320 = pneg %p319
      // Predicated region
      $region37: #{tpu_custom_call.1} parent=5 // pred_check
        _
      $region38: #{tpu_custom_call.1} parent=5 // pred_check_branch
        %322 = sbr.rel (%p319) target = $region40
      $region39: #{tpu_custom_call.1} parent=5 // pred_region
        %s323 = ssub.s32 %s21, 1
        %s324 = sand.u32 %s55, 1
        %s325 = scalar_lea.sflag [#allocation3], %s324
        %s326 = sand.u32 %s55, 1
        %s327 = smul.addr %s326, 512
        %s328 = scalar_lea.vmem [#allocation2], %s327
        // Predicated region
        $region41: #{tpu_custom_call.1} parent=39 // pred_check
          %p329 = pneg %p68
        $region42: #{tpu_custom_call.1} parent=39 // pred_check_branch
          %331 = sbr.rel (%p329) target = $region44
        $region43: #{tpu_custom_call.1} parent=39 // pred_region
          %332 = dma.done %s325, 8192
        $region44: #{tpu_custom_call.1} parent=39 // pred_fallthru
          _
        %s333 = sand.u32 %s26, 1
        %s334 = scalar_lea.sflag [#allocation6], %s333
        %s335 = sand.u32 %s81, 1
        %s336 = smul.addr %s335, 256
        %s337 = scalar_lea.vmem [#allocation5], %s336
        // Predicated region
        $region45: #{tpu_custom_call.1} parent=39 // pred_check
          %p338 = pneg %p94
        $region46: #{tpu_custom_call.1} parent=39 // pred_check_branch
          %340 = sbr.rel (%p338) target = $region48
        $region47: #{tpu_custom_call.1} parent=39 // pred_region
          %341 = dma.done %s334, 4096
        $region48: #{tpu_custom_call.1} parent=39 // pred_fallthru
          _
        %s342 = sand.u32 %s26, 1
        %s343 = scalar_lea.sflag [#allocation6], %s342
        %s344 = sand.u32 %s107, 1
        %s345 = smul.addr %s344, 2
        %s346 = scalar_lea.vmem [#allocation7], %s345
        // Predicated region
        $region49: #{tpu_custom_call.1} parent=39 // pred_check
          %p347 = pneg %p120
        $region50: #{tpu_custom_call.1} parent=39 // pred_check_branch
          %349 = sbr.rel (%p347) target = $region52
        $region51: #{tpu_custom_call.1} parent=39 // pred_region
          %350 = dma.done %s343, 32
        $region52: #{tpu_custom_call.1} parent=39 // pred_fallthru
          _
        // Predicated region
        $region53: #{tpu_custom_call.1} parent=39 // pred_check
          %p351 = pneg %p146
        $region54: #{tpu_custom_call.1} parent=39 // pred_check_branch
          %353 = sbr.rel (%p351) target = $region56
        $region55: #{tpu_custom_call.1} parent=39 // pred_region
          %354 = dma.done [#allocation9], 8192
        $region56: #{tpu_custom_call.1} parent=39 // pred_fallthru
          _
        // Predicated region
        $region57: #{tpu_custom_call.1} parent=39 // pred_check
          %p355 = pneg %p172
        $region58: #{tpu_custom_call.1} parent=39 // pred_check_branch
          %357 = sbr.rel (%p355) target = $region60
        $region59: #{tpu_custom_call.1} parent=39 // pred_region
          %358 = dma.done [#allocation9], 8192
        $region60: #{tpu_custom_call.1} parent=39 // pred_fallthru
          _
        %s359 = sand.u32 %s55, 1
        %s360 = scalar_lea.sflag [#allocation3], %s359
        %s361 = sand.u32 %s55, 1
        %s362 = smul.addr %s361, 512
        %s363 = scalar_lea.vmem [#allocation2], %s362
        %p364 = pneg %p68
        %p365 = pneg %p65
        %s366 = sand.u32 %s26, 1
        %s367 = scalar_lea.sflag [#allocation6], %s366
        %s368 = sand.u32 %s81, 1
        %s369 = smul.addr %s368, 256
        %s370 = scalar_lea.vmem [#allocation5], %s369
        %p371 = pneg %p94
        %p372 = pneg %p91
        %s373 = sand.u32 %s26, 1
        %s374 = scalar_lea.sflag [#allocation6], %s373
        %s375 = sand.u32 %s107, 1
        %s376 = smul.addr %s375, 2
        %s377 = scalar_lea.vmem [#allocation7], %s376
        %p378 = pneg %p120
        %p379 = pneg %p117
        %p380 = pneg %p146
        %p381 = pneg %p143
        %p382 = pneg %p172
        %p383 = pneg %p169
        %p384 = pneg %p202
        %p385 = pneg %p199
        %s386 = sand.u32 %s189, 1
        %s387 = scalar_lea.sflag [#allocation4], %s386
        %s388 = sand.u32 %s189, 1
        %s389 = smul.addr %s388, 512
        %s390 = scalar_lea.vmem [#allocation11], %s389
        %s391 = smul.u32 64, %s32
        %s392 = smul.u32 2, %s33
        %s393 = smul.u32 2, %s33
        %s394 = smul.u32 64, %s32
        %s395 = smul.u32 64, %s32
        %s396 = smul.u32 64, %s32
        %s397 = smul.u32 2, %s33
        %v398 = vld [vmem:[%s328] sm:$0xff]
        %v399 = vld [vmem:[%s328 + $0x8] sm:$0xff]
        %v400 = vld [vmem:[%s328 + $0x10] sm:$0xff]
        %v401 = vld [vmem:[%s328 + $0x18] sm:$0xff]
        %v402 = vld [vmem:[%s328 + $0x20] sm:$0xff]
        %v403 = vld [vmem:[%s328 + $0x28] sm:$0xff]
        %v404 = vld [vmem:[%s328 + $0x30] sm:$0xff]
        %v405 = vld [vmem:[%s328 + $0x38] sm:$0xff]
        %v406 = vld [vmem:[%s328 + $0x40] sm:$0xff]
        %v407 = vld [vmem:[%s328 + $0x48] sm:$0xff]
        %v408 = vld [vmem:[%s328 + $0x50] sm:$0xff]
        %v409 = vld [vmem:[%s328 + $0x58] sm:$0xff]
        %v410 = vld [vmem:[%s328 + $0x60] sm:$0xff]
        %v411 = vld [vmem:[%s328 + $0x68] sm:$0xff]
        %v412 = vld [vmem:[%s328 + $0x70] sm:$0xff]
        %v413 = vld [vmem:[%s328 + $0x78] sm:$0xff]
        %v414 = vld [vmem:[%s328 + $0x80] sm:$0xff]
        %v415 = vld [vmem:[%s328 + $0x88] sm:$0xff]
        %v416 = vld [vmem:[%s328 + $0x90] sm:$0xff]
        %v417 = vld [vmem:[%s328 + $0x98] sm:$0xff]
        %v418 = vld [vmem:[%s328 + $0xa0] sm:$0xff]
        %v419 = vld [vmem:[%s328 + $0xa8] sm:$0xff]
        %v420 = vld [vmem:[%s328 + $0xb0] sm:$0xff]
        %v421 = vld [vmem:[%s328 + $0xb8] sm:$0xff]
        %v422 = vld [vmem:[%s328 + $0xc0] sm:$0xff]
        %v423 = vld [vmem:[%s328 + $0xc8] sm:$0xff]
        %v424 = vld [vmem:[%s328 + $0xd0] sm:$0xff]
        %v425 = vld [vmem:[%s328 + $0xd8] sm:$0xff]
        %v426 = vld [vmem:[%s328 + $0xe0] sm:$0xff]
        %v427 = vld [vmem:[%s328 + $0xe8] sm:$0xff]
        %v428 = vld [vmem:[%s328 + $0xf0] sm:$0xff]
        %v429 = vld [vmem:[%s328 + $0xf8] sm:$0xff]
        %v430 = vld [vmem:[%s328 + $0x100] sm:$0xff]
        %v431 = vld [vmem:[%s328 + $0x108] sm:$0xff]
        %v432 = vld [vmem:[%s328 + $0x110] sm:$0xff]
        %v433 = vld [vmem:[%s328 + $0x118] sm:$0xff]
        %v434 = vld [vmem:[%s328 + $0x120] sm:$0xff]
        %v435 = vld [vmem:[%s328 + $0x128] sm:$0xff]
        %v436 = vld [vmem:[%s328 + $0x130] sm:$0xff]
        %v437 = vld [vmem:[%s328 + $0x138] sm:$0xff]
        %v438 = vld [vmem:[%s328 + $0x140] sm:$0xff]
        %v439 = vld [vmem:[%s328 + $0x148] sm:$0xff]
        %v440 = vld [vmem:[%s328 + $0x150] sm:$0xff]
        %v441 = vld [vmem:[%s328 + $0x158] sm:$0xff]
        %v442 = vld [vmem:[%s328 + $0x160] sm:$0xff]
        %v443 = vld [vmem:[%s328 + $0x168] sm:$0xff]
        %v444 = vld [vmem:[%s328 + $0x170] sm:$0xff]
        %v445 = vld [vmem:[%s328 + $0x178] sm:$0xff]
        %v446 = vld [vmem:[%s328 + $0x180] sm:$0xff]
        %v447 = vld [vmem:[%s328 + $0x188] sm:$0xff]
        %v448 = vld [vmem:[%s328 + $0x190] sm:$0xff]
        %v449 = vld [vmem:[%s328 + $0x198] sm:$0xff]
        %v450 = vld [vmem:[%s328 + $0x1a0] sm:$0xff]
        %v451 = vld [vmem:[%s328 + $0x1a8] sm:$0xff]
        %v452 = vld [vmem:[%s328 + $0x1b0] sm:$0xff]
        %v453 = vld [vmem:[%s328 + $0x1b8] sm:$0xff]
        %v454 = vld [vmem:[%s328 + $0x1c0] sm:$0xff]
        %v455 = vld [vmem:[%s328 + $0x1c8] sm:$0xff]
        %v456 = vld [vmem:[%s328 + $0x1d0] sm:$0xff]
        %v457 = vld [vmem:[%s328 + $0x1d8] sm:$0xff]
        %v458 = vld [vmem:[%s328 + $0x1e0] sm:$0xff]
        %v459 = vld [vmem:[%s328 + $0x1e8] sm:$0xff]
        %v460 = vld [vmem:[%s328 + $0x1f0] sm:$0xff]
        %v461 = vld [vmem:[%s328 + $0x1f8] sm:$0xff]
        %v462 = vld [vmem:[%s337] sm:$0xff]
        %v463 = vld [vmem:[%s337 + $0x8] sm:$0xff]
        %v464 = vld [vmem:[%s337 + $0x10] sm:$0xff]
        %v465 = vld [vmem:[%s337 + $0x18] sm:$0xff]
        %v466 = vld [vmem:[%s337 + $0x20] sm:$0xff]
        %v467 = vld [vmem:[%s337 + $0x28] sm:$0xff]
        %v468 = vld [vmem:[%s337 + $0x30] sm:$0xff]
        %v469 = vld [vmem:[%s337 + $0x38] sm:$0xff]
        %v470 = vld [vmem:[%s337 + $0x40] sm:$0xff]
        %v471 = vld [vmem:[%s337 + $0x48] sm:$0xff]
        %v472 = vld [vmem:[%s337 + $0x50] sm:$0xff]
        %v473 = vld [vmem:[%s337 + $0x58] sm:$0xff]
        %v474 = vld [vmem:[%s337 + $0x60] sm:$0xff]
        %v475 = vld [vmem:[%s337 + $0x68] sm:$0xff]
        %v476 = vld [vmem:[%s337 + $0x70] sm:$0xff]
        %v477 = vld [vmem:[%s337 + $0x78] sm:$0xff]
        %v478 = vld [vmem:[%s337 + $0x80] sm:$0xff]
        %v479 = vld [vmem:[%s337 + $0x88] sm:$0xff]
        %v480 = vld [vmem:[%s337 + $0x90] sm:$0xff]
        %v481 = vld [vmem:[%s337 + $0x98] sm:$0xff]
        %v482 = vld [vmem:[%s337 + $0xa0] sm:$0xff]
        %v483 = vld [vmem:[%s337 + $0xa8] sm:$0xff]
        %v484 = vld [vmem:[%s337 + $0xb0] sm:$0xff]
        %v485 = vld [vmem:[%s337 + $0xb8] sm:$0xff]
        %v486 = vld [vmem:[%s337 + $0xc0] sm:$0xff]
        %v487 = vld [vmem:[%s337 + $0xc8] sm:$0xff]
        %v488 = vld [vmem:[%s337 + $0xd0] sm:$0xff]
        %v489 = vld [vmem:[%s337 + $0xd8] sm:$0xff]
        %v490 = vld [vmem:[%s337 + $0xe0] sm:$0xff]
        %v491 = vld [vmem:[%s337 + $0xe8] sm:$0xff]
        %v492 = vld [vmem:[%s337 + $0xf0] sm:$0xff]
        %v493 = vld [vmem:[%s337 + $0xf8] sm:$0xff]
        %v494 = vld [vmem:[%s346] sm:$0x3]
        %v496 = vlaneseq
        %v497 = vshrl.u32 %v496, 7
        %v498 = vsub.s32 0, %v497
        %v499 = vrot.slane %v494, %v498
        %v500 = vlaneseq
        %v501 = vshrl.u32 %v500, 7
        %v502 = vsub.s32 1, %v501
        %v503 = vrot.slane %v494, %v502
        %v570 = vunpack.c.l.b16 %v398
        %v571 = vunpack.c.h.b16 %v398
        %v572 = vunpack.c.l.b16 %v399
        %v573 = vunpack.c.h.b16 %v399
        %v574 = vunpack.c.l.b16 %v400
        %v575 = vunpack.c.h.b16 %v400
        %v576 = vunpack.c.l.b16 %v401
        %v577 = vunpack.c.h.b16 %v401
        %v578 = vunpack.c.l.b16 %v402
        %v579 = vunpack.c.h.b16 %v402
        %v580 = vunpack.c.l.b16 %v403
        %v581 = vunpack.c.h.b16 %v403
        %v582 = vunpack.c.l.b16 %v404
        %v583 = vunpack.c.h.b16 %v404
        %v584 = vunpack.c.l.b16 %v405
        %v585 = vunpack.c.h.b16 %v405
        %v586 = vunpack.c.l.b16 %v406
        %v587 = vunpack.c.h.b16 %v406
        %v588 = vunpack.c.l.b16 %v407
        %v589 = vunpack.c.h.b16 %v407
        %v590 = vunpack.c.l.b16 %v408
        %v591 = vunpack.c.h.b16 %v408
        %v592 = vunpack.c.l.b16 %v409
        %v593 = vunpack.c.h.b16 %v409
        %v594 = vunpack.c.l.b16 %v410
        %v595 = vunpack.c.h.b16 %v410
        %v596 = vunpack.c.l.b16 %v411
        %v597 = vunpack.c.h.b16 %v411
        %v598 = vunpack.c.l.b16 %v412
        %v599 = vunpack.c.h.b16 %v412
        %v600 = vunpack.c.l.b16 %v413
        %v601 = vunpack.c.h.b16 %v413
        %v602 = vunpack.c.l.b16 %v414
        %v603 = vunpack.c.h.b16 %v414
        %v604 = vunpack.c.l.b16 %v415
        %v605 = vunpack.c.h.b16 %v415
        %v606 = vunpack.c.l.b16 %v416
        %v607 = vunpack.c.h.b16 %v416
        %v608 = vunpack.c.l.b16 %v417
        %v609 = vunpack.c.h.b16 %v417
        %v610 = vunpack.c.l.b16 %v418
        %v611 = vunpack.c.h.b16 %v418
        %v612 = vunpack.c.l.b16 %v419
        %v613 = vunpack.c.h.b16 %v419
        %v614 = vunpack.c.l.b16 %v420
        %v615 = vunpack.c.h.b16 %v420
        %v616 = vunpack.c.l.b16 %v421
        %v617 = vunpack.c.h.b16 %v421
        %v618 = vunpack.c.l.b16 %v422
        %v619 = vunpack.c.h.b16 %v422
        %v620 = vunpack.c.l.b16 %v423
        %v621 = vunpack.c.h.b16 %v423
        %v622 = vunpack.c.l.b16 %v424
        %v623 = vunpack.c.h.b16 %v424
        %v624 = vunpack.c.l.b16 %v425
        %v625 = vunpack.c.h.b16 %v425
        %v626 = vunpack.c.l.b16 %v426
        %v627 = vunpack.c.h.b16 %v426
        %v628 = vunpack.c.l.b16 %v427
        %v629 = vunpack.c.h.b16 %v427
        %v630 = vunpack.c.l.b16 %v428
        %v631 = vunpack.c.h.b16 %v428
        %v632 = vunpack.c.l.b16 %v429
        %v633 = vunpack.c.h.b16 %v429
        %v634 = vunpack.c.l.b16 %v430
        %v635 = vunpack.c.h.b16 %v430
        %v636 = vunpack.c.l.b16 %v431
        %v637 = vunpack.c.h.b16 %v431
        %v638 = vunpack.c.l.b16 %v432
        %v639 = vunpack.c.h.b16 %v432
        %v640 = vunpack.c.l.b16 %v433
        %v641 = vunpack.c.h.b16 %v433
        %v642 = vunpack.c.l.b16 %v434
        %v643 = vunpack.c.h.b16 %v434
        %v644 = vunpack.c.l.b16 %v435
        %v645 = vunpack.c.h.b16 %v435
        %v646 = vunpack.c.l.b16 %v436
        %v647 = vunpack.c.h.b16 %v436
        %v648 = vunpack.c.l.b16 %v437
        %v649 = vunpack.c.h.b16 %v437
        %v650 = vunpack.c.l.b16 %v438
        %v651 = vunpack.c.h.b16 %v438
        %v652 = vunpack.c.l.b16 %v439
        %v653 = vunpack.c.h.b16 %v439
        %v654 = vunpack.c.l.b16 %v440
        %v655 = vunpack.c.h.b16 %v440
        %v656 = vunpack.c.l.b16 %v441
        %v657 = vunpack.c.h.b16 %v441
        %v658 = vunpack.c.l.b16 %v442
        %v659 = vunpack.c.h.b16 %v442
        %v660 = vunpack.c.l.b16 %v443
        %v661 = vunpack.c.h.b16 %v443
        %v662 = vunpack.c.l.b16 %v444
        %v663 = vunpack.c.h.b16 %v444
        %v664 = vunpack.c.l.b16 %v445
        %v665 = vunpack.c.h.b16 %v445
        %v666 = vunpack.c.l.b16 %v446
        %v667 = vunpack.c.h.b16 %v446
        %v668 = vunpack.c.l.b16 %v447
        %v669 = vunpack.c.h.b16 %v447
        %v670 = vunpack.c.l.b16 %v448
        %v671 = vunpack.c.h.b16 %v448
        %v672 = vunpack.c.l.b16 %v449
        %v673 = vunpack.c.h.b16 %v449
        %v674 = vunpack.c.l.b16 %v450
        %v675 = vunpack.c.h.b16 %v450
        %v676 = vunpack.c.l.b16 %v451
        %v677 = vunpack.c.h.b16 %v451
        %v678 = vunpack.c.l.b16 %v452
        %v679 = vunpack.c.h.b16 %v452
        %v680 = vunpack.c.l.b16 %v453
        %v681 = vunpack.c.h.b16 %v453
        %v682 = vunpack.c.l.b16 %v454
        %v683 = vunpack.c.h.b16 %v454
        %v684 = vunpack.c.l.b16 %v455
        %v685 = vunpack.c.h.b16 %v455
        %v686 = vunpack.c.l.b16 %v456
        %v687 = vunpack.c.h.b16 %v456
        %v688 = vunpack.c.l.b16 %v457
        %v689 = vunpack.c.h.b16 %v457
        %v690 = vunpack.c.l.b16 %v458
        %v691 = vunpack.c.h.b16 %v458
        %v692 = vunpack.c.l.b16 %v459
        %v693 = vunpack.c.h.b16 %v459
        %v694 = vunpack.c.l.b16 %v460
        %v695 = vunpack.c.h.b16 %v460
        %v696 = vunpack.c.l.b16 %v461
        %v697 = vunpack.c.h.b16 %v461
        %v698 = vpack.c.b16 %v572, %v570
        %v699 = vpack.c.b16 %v573, %v571
        %v700 = vpack.c.b16 %v576, %v574
        %v701 = vpack.c.b16 %v577, %v575
        %v702 = vpack.c.b16 %v580, %v578
        %v703 = vpack.c.b16 %v581, %v579
        %v704 = vpack.c.b16 %v584, %v582
        %v705 = vpack.c.b16 %v585, %v583
        %v706 = vpack.c.b16 %v588, %v586
        %v707 = vpack.c.b16 %v589, %v587
        %v708 = vpack.c.b16 %v592, %v590
        %v709 = vpack.c.b16 %v593, %v591
        %v710 = vpack.c.b16 %v596, %v594
        %v711 = vpack.c.b16 %v597, %v595
        %v712 = vpack.c.b16 %v600, %v598
        %v713 = vpack.c.b16 %v601, %v599
        %v714 = vpack.c.b16 %v604, %v602
        %v715 = vpack.c.b16 %v605, %v603
        %v716 = vpack.c.b16 %v608, %v606
        %v717 = vpack.c.b16 %v609, %v607
        %v718 = vpack.c.b16 %v612, %v610
        %v719 = vpack.c.b16 %v613, %v611
        %v720 = vpack.c.b16 %v616, %v614
        %v721 = vpack.c.b16 %v617, %v615
        %v722 = vpack.c.b16 %v620, %v618
        %v723 = vpack.c.b16 %v621, %v619
        %v724 = vpack.c.b16 %v624, %v622
        %v725 = vpack.c.b16 %v625, %v623
        %v726 = vpack.c.b16 %v628, %v626
        %v727 = vpack.c.b16 %v629, %v627
        %v728 = vpack.c.b16 %v632, %v630
        %v729 = vpack.c.b16 %v633, %v631
        %v730 = vpack.c.b16 %v636, %v634
        %v731 = vpack.c.b16 %v637, %v635
        %v732 = vpack.c.b16 %v640, %v638
        %v733 = vpack.c.b16 %v641, %v639
        %v734 = vpack.c.b16 %v644, %v642
        %v735 = vpack.c.b16 %v645, %v643
        %v736 = vpack.c.b16 %v648, %v646
        %v737 = vpack.c.b16 %v649, %v647
        %v738 = vpack.c.b16 %v652, %v650
        %v739 = vpack.c.b16 %v653, %v651
        %v740 = vpack.c.b16 %v656, %v654
        %v741 = vpack.c.b16 %v657, %v655
        %v742 = vpack.c.b16 %v660, %v658
        %v743 = vpack.c.b16 %v661, %v659
        %v744 = vpack.c.b16 %v664, %v662
        %v745 = vpack.c.b16 %v665, %v663
        %v746 = vpack.c.b16 %v668, %v666
        %v747 = vpack.c.b16 %v669, %v667
        %v748 = vpack.c.b16 %v672, %v670
        %v749 = vpack.c.b16 %v673, %v671
        %v750 = vpack.c.b16 %v676, %v674
        %v751 = vpack.c.b16 %v677, %v675
        %v752 = vpack.c.b16 %v680, %v678
        %v753 = vpack.c.b16 %v681, %v679
        %v754 = vpack.c.b16 %v684, %v682
        %v755 = vpack.c.b16 %v685, %v683
        %v756 = vpack.c.b16 %v688, %v686
        %v757 = vpack.c.b16 %v689, %v687
        %v758 = vpack.c.b16 %v692, %v690
        %v759 = vpack.c.b16 %v693, %v691
        %v760 = vpack.c.b16 %v696, %v694
        %v761 = vpack.c.b16 %v697, %v695
        %v858 = vunpack.c.l.b16 %v462
        %v859 = vunpack.c.h.b16 %v462
        %v860 = vunpack.c.l.b16 %v463
        %v861 = vunpack.c.h.b16 %v463
        %v862 = vunpack.c.l.b16 %v464
        %v863 = vunpack.c.h.b16 %v464
        %v864 = vunpack.c.l.b16 %v465
        %v865 = vunpack.c.h.b16 %v465
        %v866 = vunpack.c.l.b16 %v466
        %v867 = vunpack.c.h.b16 %v466
        %v868 = vunpack.c.l.b16 %v467
        %v869 = vunpack.c.h.b16 %v467
        %v870 = vunpack.c.l.b16 %v468
        %v871 = vunpack.c.h.b16 %v468
        %v872 = vunpack.c.l.b16 %v469
        %v873 = vunpack.c.h.b16 %v469
        %v874 = vunpack.c.l.b16 %v470
        %v875 = vunpack.c.h.b16 %v470
        %v876 = vunpack.c.l.b16 %v471
        %v877 = vunpack.c.h.b16 %v471
        %v878 = vunpack.c.l.b16 %v472
        %v879 = vunpack.c.h.b16 %v472
        %v880 = vunpack.c.l.b16 %v473
        %v881 = vunpack.c.h.b16 %v473
        %v882 = vunpack.c.l.b16 %v474
        %v883 = vunpack.c.h.b16 %v474
        %v884 = vunpack.c.l.b16 %v475
        %v885 = vunpack.c.h.b16 %v475
        %v886 = vunpack.c.l.b16 %v476
        %v887 = vunpack.c.h.b16 %v476
        %v888 = vunpack.c.l.b16 %v477
        %v889 = vunpack.c.h.b16 %v477
        %v890 = vunpack.c.l.b16 %v478
        %v891 = vunpack.c.h.b16 %v478
        %v892 = vunpack.c.l.b16 %v479
        %v893 = vunpack.c.h.b16 %v479
        %v894 = vunpack.c.l.b16 %v480
        %v895 = vunpack.c.h.b16 %v480
        %v896 = vunpack.c.l.b16 %v481
        %v897 = vunpack.c.h.b16 %v481
        %v898 = vunpack.c.l.b16 %v482
        %v899 = vunpack.c.h.b16 %v482
        %v900 = vunpack.c.l.b16 %v483
        %v901 = vunpack.c.h.b16 %v483
        %v902 = vunpack.c.l.b16 %v484
        %v903 = vunpack.c.h.b16 %v484
        %v904 = vunpack.c.l.b16 %v485
        %v905 = vunpack.c.h.b16 %v485
        %v906 = vunpack.c.l.b16 %v486
        %v907 = vunpack.c.h.b16 %v486
        %v908 = vunpack.c.l.b16 %v487
        %v909 = vunpack.c.h.b16 %v487
        %v910 = vunpack.c.l.b16 %v488
        %v911 = vunpack.c.h.b16 %v488
        %v912 = vunpack.c.l.b16 %v489
        %v913 = vunpack.c.h.b16 %v489
        %v914 = vunpack.c.l.b16 %v490
        %v915 = vunpack.c.h.b16 %v490
        %v916 = vunpack.c.l.b16 %v491
        %v917 = vunpack.c.h.b16 %v491
        %v918 = vunpack.c.l.b16 %v492
        %v919 = vunpack.c.h.b16 %v492
        %v920 = vunpack.c.l.b16 %v493
        %v921 = vunpack.c.h.b16 %v493
        %v922 = vpack.c.b16 %v860, %v858
        %v923 = vpack.c.b16 %v861, %v859
        %v924 = vpack.c.b16 %v864, %v862
        %v925 = vpack.c.b16 %v865, %v863
        %v926 = vpack.c.b16 %v868, %v866
        %v927 = vpack.c.b16 %v869, %v867
        %v928 = vpack.c.b16 %v872, %v870
        %v929 = vpack.c.b16 %v873, %v871
        %v930 = vpack.c.b16 %v876, %v874
        %v931 = vpack.c.b16 %v877, %v875
        %v932 = vpack.c.b16 %v880, %v878
        %v933 = vpack.c.b16 %v881, %v879
        %v934 = vpack.c.b16 %v884, %v882
        %v935 = vpack.c.b16 %v885, %v883
        %v936 = vpack.c.b16 %v888, %v886
        %v937 = vpack.c.b16 %v889, %v887
        %v938 = vpack.c.b16 %v892, %v890
        %v939 = vpack.c.b16 %v893, %v891
        %v940 = vpack.c.b16 %v896, %v894
        %v941 = vpack.c.b16 %v897, %v895
        %v942 = vpack.c.b16 %v900, %v898
        %v943 = vpack.c.b16 %v901, %v899
        %v944 = vpack.c.b16 %v904, %v902
        %v945 = vpack.c.b16 %v905, %v903
        %v946 = vpack.c.b16 %v908, %v906
        %v947 = vpack.c.b16 %v909, %v907
        %v948 = vpack.c.b16 %v912, %v910
        %v949 = vpack.c.b16 %v913, %v911
        %v950 = vpack.c.b16 %v916, %v914
        %v951 = vpack.c.b16 %v917, %v915
        %v952 = vpack.c.b16 %v920, %v918
        %v953 = vpack.c.b16 %v921, %v919
        %986 = vmatprep.subr.bf16.mxu0 %v923
        %987 = vmatpush1.bf16.msra.mxu0 %v922
        %988 = vmatprep.subr.bf16.mxu0 %v925
        %989 = vmatpush1.bf16.msra.mxu0 %v924
        %990 = vmatprep.subr.bf16.mxu0 %v927
        %991 = vmatpush1.bf16.msra.mxu0 %v926
        %992 = vmatprep.subr.bf16.mxu0 %v929
        %993 = vmatpush1.bf16.msra.mxu0 %v928
        %994 = vmatprep.subr.bf16.mxu0 %v931
        %995 = vmatpush1.bf16.msra.mxu0 %v930
        %996 = vmatprep.subr.bf16.mxu0 %v933
        %997 = vmatpush1.bf16.msra.mxu0 %v932
        %998 = vmatprep.subr.bf16.mxu0 %v935
        %999 = vmatpush1.bf16.msra.mxu0 %v934
        %1000 = vmatprep.subr.bf16.mxu0 %v937
        %1001 = vmatpush1.bf16.msra.mxu0 %v936
        %1002 = vmatprep.subr.bf16.mxu0 %v939
        %1003 = vmatpush1.bf16.msra.mxu0 %v938
        %1004 = vmatprep.subr.bf16.mxu0 %v941
        %1005 = vmatpush1.bf16.msra.mxu0 %v940
        %1006 = vmatprep.subr.bf16.mxu0 %v943
        %1007 = vmatpush1.bf16.msra.mxu0 %v942
        %1008 = vmatprep.subr.bf16.mxu0 %v945
        %1009 = vmatpush1.bf16.msra.mxu0 %v944
        %1010 = vmatprep.subr.bf16.mxu0 %v947
        %1011 = vmatpush1.bf16.msra.mxu0 %v946
        %1012 = vmatprep.subr.bf16.mxu0 %v949
        %1013 = vmatpush1.bf16.msra.mxu0 %v948
        %1014 = vmatprep.subr.bf16.mxu0 %v951
        %1015 = vmatpush1.bf16.msra.mxu0 %v950
        %1016 = vmatprep.subr.bf16.mxu0 %v953
        %1017 = vmatpush1.bf16.msra.mxu0 %v952
        %1018 = vmatprep.mubr.bf16.mxu0 %v699
        %1019 = vmatmul.mubr.bf16.gmra.mrb[0].mxu0 %v698
        %v1020 = vpop.f32.mrb[0].mxu0
        %v1021 = vadd.f32 %v499, %v1020
        %v1022 = vpop.f32.mrb[0].mxu0
        %v1023 = vadd.f32 %v503, %v1022
        %v1024 = vpop.f32.mrb[0].mxu0
        %v1025 = vadd.f32 %v499, %v1024
        %v1026 = vpop.f32.mrb[0].mxu0
        %v1027 = vadd.f32 %v503, %v1026
        %1028 = vmatprep.mubr.bf16.mxu0 %v701
        %1029 = vmatmul.mubr.bf16.gmra.mrb[0].mxu0 %v700
        %v1030 = vpop.f32.mrb[0].mxu0
        %v1031 = vadd.f32 %v499, %v1030
        %v1032 = vpop.f32.mrb[0].mxu0
        %v1033 = vadd.f32 %v503, %v1032
        %v1034 = vpop.f32.mrb[0].mxu0
        %v1035 = vadd.f32 %v499, %v1034
        %v1036 = vpop.f32.mrb[0].mxu0
        %v1037 = vadd.f32 %v503, %v1036
        %1038 = vmatprep.mubr.bf16.mxu0 %v703
        %1039 = vmatmul.mubr.bf16.gmra.mrb[0].mxu0 %v702
        %v1040 = vpop.f32.mrb[0].mxu0
        %v1041 = vadd.f32 %v499, %v1040
        %v1042 = vpop.f32.mrb[0].mxu0
        %v1043 = vadd.f32 %v503, %v1042
        %v1044 = vpop.f32.mrb[0].mxu0
        %v1045 = vadd.f32 %v499, %v1044
        %v1046 = vpop.f32.mrb[0].mxu0
        %v1047 = vadd.f32 %v503, %v1046
        %1048 = vmatprep.mubr.bf16.mxu0 %v705
        %1049 = vmatmul.mubr.bf16.gmra.mrb[0].mxu0 %v704
        %v1050 = vpop.f32.mrb[0].mxu0
        %v1051 = vadd.f32 %v499, %v1050
        %v1052 = vpop.f32.mrb[0].mxu0
        %v1053 = vadd.f32 %v503, %v1052
        %v1054 = vpop.f32.mrb[0].mxu0
        %v1055 = vadd.f32 %v499, %v1054
        %v1056 = vpop.f32.mrb[0].mxu0
        %v1057 = vadd.f32 %v503, %v1056
        %1058 = vmatprep.mubr.bf16.mxu0 %v707
        %1059 = vmatmul.mubr.bf16.gmra.mrb[0].mxu0 %v706
        %v1060 = vpop.f32.mrb[0].mxu0
        %v1061 = vadd.f32 %v499, %v1060
        %v1062 = vpop.f32.mrb[0].mxu0
        %v1063 = vadd.f32 %v503, %v1062
        %v1064 = vpop.f32.mrb[0].mxu0
        %v1065 = vadd.f32 %v499, %v1064
        %v1066 = vpop.f32.mrb[0].mxu0
        %v1067 = vadd.f32 %v503, %v1066
        %1068 = vmatprep.mubr.bf16.mxu0 %v709
        %1069 = vmatmul.mubr.bf16.gmra.mrb[0].mxu0 %v708
        %v1070 = vpop.f32.mrb[0].mxu0
        %v1071 = vadd.f32 %v499, %v1070
        %v1072 = vpop.f32.mrb[0].mxu0
        %v1073 = vadd.f32 %v503, %v1072
        %v1074 = vpop.f32.mrb[0].mxu0
        %v1075 = vadd.f32 %v499, %v1074
        %v1076 = vpop.f32.mrb[0].mxu0
        %v1077 = vadd.f32 %v503, %v1076
        %1078 = vmatprep.mubr.bf16.mxu0 %v711
        %1079 = vmatmul.mubr.bf16.gmra.mrb[0].mxu0 %v710
        %v1080 = vpop.f32.mrb[0].mxu0
        %v1081 = vadd.f32 %v499, %v1080
        %v1082 = vpop.f32.mrb[0].mxu0
        %v1083 = vadd.f32 %v503, %v1082
        %v1084 = vpop.f32.mrb[0].mxu0
        %v1085 = vadd.f32 %v499, %v1084
        %v1086 = vpop.f32.mrb[0].mxu0
        %v1087 = vadd.f32 %v503, %v1086
        %1088 = vmatprep.mubr.bf16.mxu0 %v713
        %1089 = vmatmul.mubr.bf16.gmra.mrb[0].mxu0 %v712
        %v1090 = vpop.f32.mrb[0].mxu0
        %v1091 = vadd.f32 %v499, %v1090
        %v1092 = vpop.f32.mrb[0].mxu0
        %v1093 = vadd.f32 %v503, %v1092
        %v1094 = vpop.f32.mrb[0].mxu0
        %v1095 = vadd.f32 %v499, %v1094
        %v1096 = vpop.f32.mrb[0].mxu0
        %v1097 = vadd.f32 %v503, %v1096
        %1098 = vmatprep.mubr.bf16.mxu0 %v715
        %1099 = vmatmul.mubr.bf16.gmra.mrb[0].mxu0 %v714
        %v1100 = vpop.f32.mrb[0].mxu0
        %v1101 = vadd.f32 %v499, %v1100
        %v1102 = vpop.f32.mrb[0].mxu0
        %v1103 = vadd.f32 %v503, %v1102
        %v1104 = vpop.f32.mrb[0].mxu0
        %v1105 = vadd.f32 %v499, %v1104
        %v1106 = vpop.f32.mrb[0].mxu0
        %v1107 = vadd.f32 %v503, %v1106
        %1108 = vmatprep.mubr.bf16.mxu0 %v717
        %1109 = vmatmul.mubr.bf16.gmra.mrb[0].mxu0 %v716
        %v1110 = vpop.f32.mrb[0].mxu0
        %v1111 = vadd.f32 %v499, %v1110
        %v1112 = vpop.f32.mrb[0].mxu0
        %v1113 = vadd.f32 %v503, %v1112
        %v1114 = vpop.f32.mrb[0].mxu0
        %v1115 = vadd.f32 %v499, %v1114
        %v1116 = vpop.f32.mrb[0].mxu0
        %v1117 = vadd.f32 %v503, %v1116
        %1118 = vmatprep.mubr.bf16.mxu0 %v719
        %1119 = vmatmul.mubr.bf16.gmra.mrb[0].mxu0 %v718
        %v1120 = vpop.f32.mrb[0].mxu0
        %v1121 = vadd.f32 %v499, %v1120
        %v1122 = vpop.f32.mrb[0].mxu0
        %v1123 = vadd.f32 %v503, %v1122
        %v1124 = vpop.f32.mrb[0].mxu0
        %v1125 = vadd.f32 %v499, %v1124
        %v1126 = vpop.f32.mrb[0].mxu0
        %v1127 = vadd.f32 %v503, %v1126
        %1128 = vmatprep.mubr.bf16.mxu0 %v721
        %1129 = vmatmul.mubr.bf16.gmra.mrb[0].mxu0 %v720
        %v1130 = vpop.f32.mrb[0].mxu0
        %v1131 = vadd.f32 %v499, %v1130
        %v1132 = vpop.f32.mrb[0].mxu0
        %v1133 = vadd.f32 %v503, %v1132
        %v1134 = vpop.f32.mrb[0].mxu0
        %v1135 = vadd.f32 %v499, %v1134
        %v1136 = vpop.f32.mrb[0].mxu0
        %v1137 = vadd.f32 %v503, %v1136
        %1138 = vmatprep.mubr.bf16.mxu0 %v723
        %1139 = vmatmul.mubr.bf16.gmra.mrb[0].mxu0 %v722
        %v1140 = vpop.f32.mrb[0].mxu0
        %v1141 = vadd.f32 %v499, %v1140
        %v1142 = vpop.f32.mrb[0].mxu0
        %v1143 = vadd.f32 %v503, %v1142
        %v1144 = vpop.f32.mrb[0].mxu0
        %v1145 = vadd.f32 %v499, %v1144
        %v1146 = vpop.f32.mrb[0].mxu0
        %v1147 = vadd.f32 %v503, %v1146
        %1148 = vmatprep.mubr.bf16.mxu0 %v725
        %1149 = vmatmul.mubr.bf16.gmra.mrb[0].mxu0 %v724
        %v1150 = vpop.f32.mrb[0].mxu0
        %v1151 = vadd.f32 %v499, %v1150
        %v1152 = vpop.f32.mrb[0].mxu0
        %v1153 = vadd.f32 %v503, %v1152
        %v1154 = vpop.f32.mrb[0].mxu0
        %v1155 = vadd.f32 %v499, %v1154
        %v1156 = vpop.f32.mrb[0].mxu0
        %v1157 = vadd.f32 %v503, %v1156
        %1158 = vmatprep.mubr.bf16.mxu0 %v727
        %1159 = vmatmul.mubr.bf16.gmra.mrb[0].mxu0 %v726
        %v1160 = vpop.f32.mrb[0].mxu0
        %v1161 = vadd.f32 %v499, %v1160
        %v1162 = vpop.f32.mrb[0].mxu0
        %v1163 = vadd.f32 %v503, %v1162
        %v1164 = vpop.f32.mrb[0].mxu0
        %v1165 = vadd.f32 %v499, %v1164
        %v1166 = vpop.f32.mrb[0].mxu0
        %v1167 = vadd.f32 %v503, %v1166
        %1168 = vmatprep.mubr.bf16.mxu0 %v729
        %1169 = vmatmul.mubr.bf16.gmra.mrb[0].mxu0 %v728
        %v1170 = vpop.f32.mrb[0].mxu0
        %v1171 = vadd.f32 %v499, %v1170
        %v1172 = vpop.f32.mrb[0].mxu0
        %v1173 = vadd.f32 %v503, %v1172
        %v1174 = vpop.f32.mrb[0].mxu0
        %v1175 = vadd.f32 %v499, %v1174
        %v1176 = vpop.f32.mrb[0].mxu0
        %v1177 = vadd.f32 %v503, %v1176
        %1178 = vmatprep.mubr.bf16.mxu0 %v731
        %1179 = vmatmul.mubr.bf16.gmra.mrb[0].mxu0 %v730
        %v1180 = vpop.f32.mrb[0].mxu0
        %v1181 = vadd.f32 %v499, %v1180
        %v1182 = vpop.f32.mrb[0].mxu0
        %v1183 = vadd.f32 %v503, %v1182
        %v1184 = vpop.f32.mrb[0].mxu0
        %v1185 = vadd.f32 %v499, %v1184
        %v1186 = vpop.f32.mrb[0].mxu0
        %v1187 = vadd.f32 %v503, %v1186
        %1188 = vmatprep.mubr.bf16.mxu0 %v733
        %1189 = vmatmul.mubr.bf16.gmra.mrb[0].mxu0 %v732
        %v1190 = vpop.f32.mrb[0].mxu0
        %v1191 = vadd.f32 %v499, %v1190
        %v1192 = vpop.f32.mrb[0].mxu0
        %v1193 = vadd.f32 %v503, %v1192
        %v1194 = vpop.f32.mrb[0].mxu0
        %v1195 = vadd.f32 %v499, %v1194
        %v1196 = vpop.f32.mrb[0].mxu0
        %v1197 = vadd.f32 %v503, %v1196
        %1198 = vmatprep.mubr.bf16.mxu0 %v735
        %1199 = vmatmul.mubr.bf16.gmra.mrb[0].mxu0 %v734
        %v1200 = vpop.f32.mrb[0].mxu0
        %v1201 = vadd.f32 %v499, %v1200
        %v1202 = vpop.f32.mrb[0].mxu0
        %v1203 = vadd.f32 %v503, %v1202
        %v1204 = vpop.f32.mrb[0].mxu0
        %v1205 = vadd.f32 %v499, %v1204
        %v1206 = vpop.f32.mrb[0].mxu0
        %v1207 = vadd.f32 %v503, %v1206
        %1208 = vmatprep.mubr.bf16.mxu0 %v737
        %1209 = vmatmul.mubr.bf16.gmra.mrb[0].mxu0 %v736
        %v1210 = vpop.f32.mrb[0].mxu0
        %v1211 = vadd.f32 %v499, %v1210
        %v1212 = vpop.f32.mrb[0].mxu0
        %v1213 = vadd.f32 %v503, %v1212
        %v1214 = vpop.f32.mrb[0].mxu0
        %v1215 = vadd.f32 %v499, %v1214
        %v1216 = vpop.f32.mrb[0].mxu0
        %v1217 = vadd.f32 %v503, %v1216
        %1218 = vmatprep.mubr.bf16.mxu0 %v739
        %1219 = vmatmul.mubr.bf16.gmra.mrb[0].mxu0 %v738
        %v1220 = vpop.f32.mrb[0].mxu0
        %v1221 = vadd.f32 %v499, %v1220
        %v1222 = vpop.f32.mrb[0].mxu0
        %v1223 = vadd.f32 %v503, %v1222
        %v1224 = vpop.f32.mrb[0].mxu0
        %v1225 = vadd.f32 %v499, %v1224
        %v1226 = vpop.f32.mrb[0].mxu0
        %v1227 = vadd.f32 %v503, %v1226
        %1228 = vmatprep.mubr.bf16.mxu0 %v741
        %1229 = vmatmul.mubr.bf16.gmra.mrb[0].mxu0 %v740
        %v1230 = vpop.f32.mrb[0].mxu0
        %v1231 = vadd.f32 %v499, %v1230
        %v1232 = vpop.f32.mrb[0].mxu0
        %v1233 = vadd.f32 %v503, %v1232
        %v1234 = vpop.f32.mrb[0].mxu0
        %v1235 = vadd.f32 %v499, %v1234
        %v1236 = vpop.f32.mrb[0].mxu0
        %v1237 = vadd.f32 %v503, %v1236
        %1238 = vmatprep.mubr.bf16.mxu0 %v743
        %1239 = vmatmul.mubr.bf16.gmra.mrb[0].mxu0 %v742
        %v1240 = vpop.f32.mrb[0].mxu0
        %v1241 = vadd.f32 %v499, %v1240
        %v1242 = vpop.f32.mrb[0].mxu0
        %v1243 = vadd.f32 %v503, %v1242
        %v1244 = vpop.f32.mrb[0].mxu0
        %v1245 = vadd.f32 %v499, %v1244
        %v1246 = vpop.f32.mrb[0].mxu0
        %v1247 = vadd.f32 %v503, %v1246
        %1248 = vmatprep.mubr.bf16.mxu0 %v745
        %1249 = vmatmul.mubr.bf16.gmra.mrb[0].mxu0 %v744
        %v1250 = vpop.f32.mrb[0].mxu0
        %v1251 = vadd.f32 %v499, %v1250
        %v1252 = vpop.f32.mrb[0].mxu0
        %v1253 = vadd.f32 %v503, %v1252
        %v1254 = vpop.f32.mrb[0].mxu0
        %v1255 = vadd.f32 %v499, %v1254
        %v1256 = vpop.f32.mrb[0].mxu0
        %v1257 = vadd.f32 %v503, %v1256
        %1258 = vmatprep.mubr.bf16.mxu0 %v747
        %1259 = vmatmul.mubr.bf16.gmra.mrb[0].mxu0 %v746
        %v1260 = vpop.f32.mrb[0].mxu0
        %v1261 = vadd.f32 %v499, %v1260
        %v1262 = vpop.f32.mrb[0].mxu0
        %v1263 = vadd.f32 %v503, %v1262
        %v1264 = vpop.f32.mrb[0].mxu0
        %v1265 = vadd.f32 %v499, %v1264
        %v1266 = vpop.f32.mrb[0].mxu0
        %v1267 = vadd.f32 %v503, %v1266
        %1268 = vmatprep.mubr.bf16.mxu0 %v749
        %1269 = vmatmul.mubr.bf16.gmra.mrb[0].mxu0 %v748
        %v1270 = vpop.f32.mrb[0].mxu0
        %v1271 = vadd.f32 %v499, %v1270
        %v1272 = vpop.f32.mrb[0].mxu0
        %v1273 = vadd.f32 %v503, %v1272
        %v1274 = vpop.f32.mrb[0].mxu0
        %v1275 = vadd.f32 %v499, %v1274
        %v1276 = vpop.f32.mrb[0].mxu0
        %v1277 = vadd.f32 %v503, %v1276
        %1278 = vmatprep.mubr.bf16.mxu0 %v751
        %1279 = vmatmul.mubr.bf16.gmra.mrb[0].mxu0 %v750
        %v1280 = vpop.f32.mrb[0].mxu0
        %v1281 = vadd.f32 %v499, %v1280
        %v1282 = vpop.f32.mrb[0].mxu0
        %v1283 = vadd.f32 %v503, %v1282
        %v1284 = vpop.f32.mrb[0].mxu0
        %v1285 = vadd.f32 %v499, %v1284
        %v1286 = vpop.f32.mrb[0].mxu0
        %v1287 = vadd.f32 %v503, %v1286
        %1288 = vmatprep.mubr.bf16.mxu0 %v753
        %1289 = vmatmul.mubr.bf16.gmra.mrb[0].mxu0 %v752
        %v1290 = vpop.f32.mrb[0].mxu0
        %v1291 = vadd.f32 %v499, %v1290
        %v1292 = vpop.f32.mrb[0].mxu0
        %v1293 = vadd.f32 %v503, %v1292
        %v1294 = vpop.f32.mrb[0].mxu0
        %v1295 = vadd.f32 %v499, %v1294
        %v1296 = vpop.f32.mrb[0].mxu0
        %v1297 = vadd.f32 %v503, %v1296
        %1298 = vmatprep.mubr.bf16.mxu0 %v755
        %1299 = vmatmul.mubr.bf16.gmra.mrb[0].mxu0 %v754
        %v1300 = vpop.f32.mrb[0].mxu0
        %v1301 = vadd.f32 %v499, %v1300
        %v1302 = vpop.f32.mrb[0].mxu0
        %v1303 = vadd.f32 %v503, %v1302
        %v1304 = vpop.f32.mrb[0].mxu0
        %v1305 = vadd.f32 %v499, %v1304
        %v1306 = vpop.f32.mrb[0].mxu0
        %v1307 = vadd.f32 %v503, %v1306
        %1308 = vmatprep.mubr.bf16.mxu0 %v757
        %1309 = vmatmul.mubr.bf16.gmra.mrb[0].mxu0 %v756
        %v1310 = vpop.f32.mrb[0].mxu0
        %v1311 = vadd.f32 %v499, %v1310
        %v1312 = vpop.f32.mrb[0].mxu0
        %v1313 = vadd.f32 %v503, %v1312
        %v1314 = vpop.f32.mrb[0].mxu0
        %v1315 = vadd.f32 %v499, %v1314
        %v1316 = vpop.f32.mrb[0].mxu0
        %v1317 = vadd.f32 %v503, %v1316
        %1318 = vmatprep.mubr.bf16.mxu0 %v759
        %1319 = vmatmul.mubr.bf16.gmra.mrb[0].mxu0 %v758
        %v1320 = vpop.f32.mrb[0].mxu0
        %v1321 = vadd.f32 %v499, %v1320
        %v1322 = vpop.f32.mrb[0].mxu0
        %v1323 = vadd.f32 %v503, %v1322
        %v1324 = vpop.f32.mrb[0].mxu0
        %v1325 = vadd.f32 %v499, %v1324
        %v1326 = vpop.f32.mrb[0].mxu0
        %v1327 = vadd.f32 %v503, %v1326
        %1328 = vmatprep.mubr.bf16.mxu0 %v761
        %1329 = vmatmul.mubr.bf16.gmra.mrb[0].mxu0 %v760
        %v1330 = vpop.f32.mrb[0].mxu0
        %v1331 = vadd.f32 %v499, %v1330
        %v1332 = vpop.f32.mrb[0].mxu0
        %v1333 = vadd.f32 %v503, %v1332
        %v1334 = vpop.f32.mrb[0].mxu0
        %v1335 = vadd.f32 %v499, %v1334
        %v1336 = vpop.f32.mrb[0].mxu0
        %v1337 = vadd.f32 %v503, %v1336
        %1338 = vdwg.mxu0
        %p1339 = scmp.lt.s32.totalorder %s33, 2
        // Predicated region
        $region61: #{tpu_custom_call.1} parent=39 // pred_check
          %p1340 = pneg %p1339
        $region62: #{tpu_custom_call.1} parent=39 // pred_check_branch
          %1342 = sbr.rel (%p1340) target = $region64
        $region63: #{tpu_custom_call.1} parent=39 // pred_region
          %v1343 = vld [vmem:[#allocation8] sm:$0xff]
          %v1344 = vld [vmem:[#allocation8 + $0x8] sm:$0xff]
          %v1345 = vld [vmem:[#allocation8 + $0x10] sm:$0xff]
          %v1346 = vld [vmem:[#allocation8 + $0x18] sm:$0xff]
          %v1347 = vld [vmem:[#allocation8 + $0x20] sm:$0xff]
          %v1348 = vld [vmem:[#allocation8 + $0x28] sm:$0xff]
          %v1349 = vld [vmem:[#allocation8 + $0x30] sm:$0xff]
          %v1350 = vld [vmem:[#allocation8 + $0x38] sm:$0xff]
          %v1351 = vld [vmem:[#allocation8 + $0x40] sm:$0xff]
          %v1352 = vld [vmem:[#allocation8 + $0x48] sm:$0xff]
          %v1353 = vld [vmem:[#allocation8 + $0x50] sm:$0xff]
          %v1354 = vld [vmem:[#allocation8 + $0x58] sm:$0xff]
          %v1355 = vld [vmem:[#allocation8 + $0x60] sm:$0xff]
          %v1356 = vld [vmem:[#allocation8 + $0x68] sm:$0xff]
          %v1357 = vld [vmem:[#allocation8 + $0x70] sm:$0xff]
          %v1358 = vld [vmem:[#allocation8 + $0x78] sm:$0xff]
          %v1359 = vld [vmem:[#allocation8 + $0x80] sm:$0xff]
          %v1360 = vld [vmem:[#allocation8 + $0x88] sm:$0xff]
          %v1361 = vld [vmem:[#allocation8 + $0x90] sm:$0xff]
          %v1362 = vld [vmem:[#allocation8 + $0x98] sm:$0xff]
          %v1363 = vld [vmem:[#allocation8 + $0xa0] sm:$0xff]
          %v1364 = vld [vmem:[#allocation8 + $0xa8] sm:$0xff]
          %v1365 = vld [vmem:[#allocation8 + $0xb0] sm:$0xff]
          %v1366 = vld [vmem:[#allocation8 + $0xb8] sm:$0xff]
          %v1367 = vld [vmem:[#allocation8 + $0xc0] sm:$0xff]
          %v1368 = vld [vmem:[#allocation8 + $0xc8] sm:$0xff]
          %v1369 = vld [vmem:[#allocation8 + $0xd0] sm:$0xff]
          %v1370 = vld [vmem:[#allocation8 + $0xd8] sm:$0xff]
          %v1371 = vld [vmem:[#allocation8 + $0xe0] sm:$0xff]
          %v1372 = vld [vmem:[#allocation8 + $0xe8] sm:$0xff]
          %v1373 = vld [vmem:[#allocation8 + $0xf0] sm:$0xff]
          %v1374 = vld [vmem:[#allocation8 + $0xf8] sm:$0xff]
          %v1375 = vld [vmem:[#allocation8 + $0x100] sm:$0xff]
          %v1376 = vld [vmem:[#allocation8 + $0x108] sm:$0xff]
          %v1377 = vld [vmem:[#allocation8 + $0x110] sm:$0xff]
          %v1378 = vld [vmem:[#allocation8 + $0x118] sm:$0xff]
          %v1379 = vld [vmem:[#allocation8 + $0x120] sm:$0xff]
          %v1380 = vld [vmem:[#allocation8 + $0x128] sm:$0xff]
          %v1381 = vld [vmem:[#allocation8 + $0x130] sm:$0xff]
          %v1382 = vld [vmem:[#allocation8 + $0x138] sm:$0xff]
          %v1383 = vld [vmem:[#allocation8 + $0x140] sm:$0xff]
          %v1384 = vld [vmem:[#allocation8 + $0x148] sm:$0xff]
          %v1385 = vld [vmem:[#allocation8 + $0x150] sm:$0xff]
          %v1386 = vld [vmem:[#allocation8 + $0x158] sm:$0xff]
          %v1387 = vld [vmem:[#allocation8 + $0x160] sm:$0xff]
          %v1388 = vld [vmem:[#allocation8 + $0x168] sm:$0xff]
          %v1389 = vld [vmem:[#allocation8 + $0x170] sm:$0xff]
          %v1390 = vld [vmem:[#allocation8 + $0x178] sm:$0xff]
          %v1391 = vld [vmem:[#allocation8 + $0x180] sm:$0xff]
          %v1392 = vld [vmem:[#allocation8 + $0x188] sm:$0xff]
          %v1393 = vld [vmem:[#allocation8 + $0x190] sm:$0xff]
          %v1394 = vld [vmem:[#allocation8 + $0x198] sm:$0xff]
          %v1395 = vld [vmem:[#allocation8 + $0x1a0] sm:$0xff]
          %v1396 = vld [vmem:[#allocation8 + $0x1a8] sm:$0xff]
          %v1397 = vld [vmem:[#allocation8 + $0x1b0] sm:$0xff]
          %v1398 = vld [vmem:[#allocation8 + $0x1b8] sm:$0xff]
          %v1399 = vld [vmem:[#allocation8 + $0x1c0] sm:$0xff]
          %v1400 = vld [vmem:[#allocation8 + $0x1c8] sm:$0xff]
          %v1401 = vld [vmem:[#allocation8 + $0x1d0] sm:$0xff]
          %v1402 = vld [vmem:[#allocation8 + $0x1d8] sm:$0xff]
          %v1403 = vld [vmem:[#allocation8 + $0x1e0] sm:$0xff]
          %v1404 = vld [vmem:[#allocation8 + $0x1e8] sm:$0xff]
          %v1405 = vld [vmem:[#allocation8 + $0x1f0] sm:$0xff]
          %v1406 = vld [vmem:[#allocation8 + $0x1f8] sm:$0xff]
          %v1407 = vld [vmem:[#allocation10] sm:$0xff]
          %v1408 = vld [vmem:[#allocation10 + $0x8] sm:$0xff]
          %v1409 = vld [vmem:[#allocation10 + $0x10] sm:$0xff]
          %v1410 = vld [vmem:[#allocation10 + $0x18] sm:$0xff]
          %v1411 = vld [vmem:[#allocation10 + $0x20] sm:$0xff]
          %v1412 = vld [vmem:[#allocation10 + $0x28] sm:$0xff]
          %v1413 = vld [vmem:[#allocation10 + $0x30] sm:$0xff]
          %v1414 = vld [vmem:[#allocation10 + $0x38] sm:$0xff]
          %v1415 = vld [vmem:[#allocation10 + $0x40] sm:$0xff]
          %v1416 = vld [vmem:[#allocation10 + $0x48] sm:$0xff]
          %v1417 = vld [vmem:[#allocation10 + $0x50] sm:$0xff]
          %v1418 = vld [vmem:[#allocation10 + $0x58] sm:$0xff]
          %v1419 = vld [vmem:[#allocation10 + $0x60] sm:$0xff]
          %v1420 = vld [vmem:[#allocation10 + $0x68] sm:$0xff]
          %v1421 = vld [vmem:[#allocation10 + $0x70] sm:$0xff]
          %v1422 = vld [vmem:[#allocation10 + $0x78] sm:$0xff]
          %v1423 = vld [vmem:[#allocation10 + $0x80] sm:$0xff]
          %v1424 = vld [vmem:[#allocation10 + $0x88] sm:$0xff]
          %v1425 = vld [vmem:[#allocation10 + $0x90] sm:$0xff]
          %v1426 = vld [vmem:[#allocation10 + $0x98] sm:$0xff]
          %v1427 = vld [vmem:[#allocation10 + $0xa0] sm:$0xff]
          %v1428 = vld [vmem:[#allocation10 + $0xa8] sm:$0xff]
          %v1429 = vld [vmem:[#allocation10 + $0xb0] sm:$0xff]
          %v1430 = vld [vmem:[#allocation10 + $0xb8] sm:$0xff]
          %v1431 = vld [vmem:[#allocation10 + $0xc0] sm:$0xff]
          %v1432 = vld [vmem:[#allocation10 + $0xc8] sm:$0xff]
          %v1433 = vld [vmem:[#allocation10 + $0xd0] sm:$0xff]
          %v1434 = vld [vmem:[#allocation10 + $0xd8] sm:$0xff]
          %v1435 = vld [vmem:[#allocation10 + $0xe0] sm:$0xff]
          %v1436 = vld [vmem:[#allocation10 + $0xe8] sm:$0xff]
          %v1437 = vld [vmem:[#allocation10 + $0xf0] sm:$0xff]
          %v1438 = vld [vmem:[#allocation10 + $0xf8] sm:$0xff]
          %v1439 = vld [vmem:[#allocation10 + $0x100] sm:$0xff]
          %v1440 = vld [vmem:[#allocation10 + $0x108] sm:$0xff]
          %v1441 = vld [vmem:[#allocation10 + $0x110] sm:$0xff]
          %v1442 = vld [vmem:[#allocation10 + $0x118] sm:$0xff]
          %v1443 = vld [vmem:[#allocation10 + $0x120] sm:$0xff]
          %v1444 = vld [vmem:[#allocation10 + $0x128] sm:$0xff]
          %v1445 = vld [vmem:[#allocation10 + $0x130] sm:$0xff]
          %v1446 = vld [vmem:[#allocation10 + $0x138] sm:$0xff]
          %v1447 = vld [vmem:[#allocation10 + $0x140] sm:$0xff]
          %v1448 = vld [vmem:[#allocation10 + $0x148] sm:$0xff]
          %v1449 = vld [vmem:[#allocation10 + $0x150] sm:$0xff]
          %v1450 = vld [vmem:[#allocation10 + $0x158] sm:$0xff]
          %v1451 = vld [vmem:[#allocation10 + $0x160] sm:$0xff]
          %v1452 = vld [vmem:[#allocation10 + $0x168] sm:$0xff]
          %v1453 = vld [vmem:[#allocation10 + $0x170] sm:$0xff]
          %v1454 = vld [vmem:[#allocation10 + $0x178] sm:$0xff]
          %v1455 = vld [vmem:[#allocation10 + $0x180] sm:$0xff]
          %v1456 = vld [vmem:[#allocation10 + $0x188] sm:$0xff]
          %v1457 = vld [vmem:[#allocation10 + $0x190] sm:$0xff]
          %v1458 = vld [vmem:[#allocation10 + $0x198] sm:$0xff]
          %v1459 = vld [vmem:[#allocation10 + $0x1a0] sm:$0xff]
          %v1460 = vld [vmem:[#allocation10 + $0x1a8] sm:$0xff]
          %v1461 = vld [vmem:[#allocation10 + $0x1b0] sm:$0xff]
          %v1462 = vld [vmem:[#allocation10 + $0x1b8] sm:$0xff]
          %v1463 = vld [vmem:[#allocation10 + $0x1c0] sm:$0xff]
          %v1464 = vld [vmem:[#allocation10 + $0x1c8] sm:$0xff]
          %v1465 = vld [vmem:[#allocation10 + $0x1d0] sm:$0xff]
          %v1466 = vld [vmem:[#allocation10 + $0x1d8] sm:$0xff]
          %v1467 = vld [vmem:[#allocation10 + $0x1e0] sm:$0xff]
          %v1468 = vld [vmem:[#allocation10 + $0x1e8] sm:$0xff]
          %v1469 = vld [vmem:[#allocation10 + $0x1f0] sm:$0xff]
          %v1470 = vld [vmem:[#allocation10 + $0x1f8] sm:$0xff]
          %1471 = vrot.lane.b32.xlu0 %v1021, 64
          %v1472 = vpop.permute.xlu0 %1471
          %1473 = vrot.lane.b32.xlu0 %v1025, 64
          %v1474 = vpop.permute.xlu0 %1473
          %1475 = vrot.lane.b32.xlu0 %v1031, 64
          %v1476 = vpop.permute.xlu0 %1475
          %1477 = vrot.lane.b32.xlu0 %v1035, 64
          %v1478 = vpop.permute.xlu0 %1477
          %1479 = vrot.lane.b32.xlu0 %v1041, 64
          %v1480 = vpop.permute.xlu0 %1479
          %1481 = vrot.lane.b32.xlu0 %v1045, 64
          %v1482 = vpop.permute.xlu0 %1481
          %1483 = vrot.lane.b32.xlu0 %v1051, 64
          %v1484 = vpop.permute.xlu0 %1483
          %1485 = vrot.lane.b32.xlu0 %v1055, 64
          %v1486 = vpop.permute.xlu0 %1485
          %1487 = vrot.lane.b32.xlu0 %v1061, 64
          %v1488 = vpop.permute.xlu0 %1487
          %1489 = vrot.lane.b32.xlu0 %v1065, 64
          %v1490 = vpop.permute.xlu0 %1489
          %1491 = vrot.lane.b32.xlu0 %v1071, 64
          %v1492 = vpop.permute.xlu0 %1491
          %1493 = vrot.lane.b32.xlu0 %v1075, 64
          %v1494 = vpop.permute.xlu0 %1493
          %1495 = vrot.lane.b32.xlu0 %v1081, 64
          %v1496 = vpop.permute.xlu0 %1495
          %1497 = vrot.lane.b32.xlu0 %v1085, 64
          %v1498 = vpop.permute.xlu0 %1497
          %1499 = vrot.lane.b32.xlu0 %v1091, 64
          %v1500 = vpop.permute.xlu0 %1499
          %1501 = vrot.lane.b32.xlu0 %v1095, 64
          %v1502 = vpop.permute.xlu0 %1501
          %1503 = vrot.lane.b32.xlu0 %v1101, 64
          %v1504 = vpop.permute.xlu0 %1503
          %1505 = vrot.lane.b32.xlu0 %v1105, 64
          %v1506 = vpop.permute.xlu0 %1505
          %1507 = vrot.lane.b32.xlu0 %v1111, 64
          %v1508 = vpop.permute.xlu0 %1507
          %1509 = vrot.lane.b32.xlu0 %v1115, 64
          %v1510 = vpop.permute.xlu0 %1509
          %1511 = vrot.lane.b32.xlu0 %v1121, 64
          %v1512 = vpop.permute.xlu0 %1511
          %1513 = vrot.lane.b32.xlu0 %v1125, 64
          %v1514 = vpop.permute.xlu0 %1513
          %1515 = vrot.lane.b32.xlu0 %v1131, 64
          %v1516 = vpop.permute.xlu0 %1515
          %1517 = vrot.lane.b32.xlu0 %v1135, 64
          %v1518 = vpop.permute.xlu0 %1517
          %1519 = vrot.lane.b32.xlu0 %v1141, 64
          %v1520 = vpop.permute.xlu0 %1519
          %1521 = vrot.lane.b32.xlu0 %v1145, 64
          %v1522 = vpop.permute.xlu0 %1521
          %1523 = vrot.lane.b32.xlu0 %v1151, 64
          %v1524 = vpop.permute.xlu0 %1523
          %1525 = vrot.lane.b32.xlu0 %v1155, 64
          %v1526 = vpop.permute.xlu0 %1525
          %1527 = vrot.lane.b32.xlu0 %v1161, 64
          %v1528 = vpop.permute.xlu0 %1527
          %1529 = vrot.lane.b32.xlu0 %v1165, 64
          %v1530 = vpop.permute.xlu0 %1529
          %1531 = vrot.lane.b32.xlu0 %v1171, 64
          %v1532 = vpop.permute.xlu0 %1531
          %1533 = vrot.lane.b32.xlu0 %v1175, 64
          %v1534 = vpop.permute.xlu0 %1533
          %1535 = vrot.lane.b32.xlu0 %v1181, 64
          %v1536 = vpop.permute.xlu0 %1535
          %1537 = vrot.lane.b32.xlu0 %v1185, 64
          %v1538 = vpop.permute.xlu0 %1537
          %1539 = vrot.lane.b32.xlu0 %v1191, 64
          %v1540 = vpop.permute.xlu0 %1539
          %1541 = vrot.lane.b32.xlu0 %v1195, 64
          %v1542 = vpop.permute.xlu0 %1541
          %1543 = vrot.lane.b32.xlu0 %v1201, 64
          %v1544 = vpop.permute.xlu0 %1543
          %1545 = vrot.lane.b32.xlu0 %v1205, 64
          %v1546 = vpop.permute.xlu0 %1545
          %1547 = vrot.lane.b32.xlu0 %v1211, 64
          %v1548 = vpop.permute.xlu0 %1547
          %1549 = vrot.lane.b32.xlu0 %v1215, 64
          %v1550 = vpop.permute.xlu0 %1549
          %1551 = vrot.lane.b32.xlu0 %v1221, 64
          %v1552 = vpop.permute.xlu0 %1551
          %1553 = vrot.lane.b32.xlu0 %v1225, 64
          %v1554 = vpop.permute.xlu0 %1553
          %1555 = vrot.lane.b32.xlu0 %v1231, 64
          %v1556 = vpop.permute.xlu0 %1555
          %1557 = vrot.lane.b32.xlu0 %v1235, 64
          %v1558 = vpop.permute.xlu0 %1557
          %1559 = vrot.lane.b32.xlu0 %v1241, 64
          %v1560 = vpop.permute.xlu0 %1559
          %1561 = vrot.lane.b32.xlu0 %v1245, 64
          %v1562 = vpop.permute.xlu0 %1561
          %1563 = vrot.lane.b32.xlu0 %v1251, 64
          %v1564 = vpop.permute.xlu0 %1563
          %1565 = vrot.lane.b32.xlu0 %v1255, 64
          %v1566 = vpop.permute.xlu0 %1565
          %1567 = vrot.lane.b32.xlu0 %v1261, 64
          %v1568 = vpop.permute.xlu0 %1567
          %1569 = vrot.lane.b32.xlu0 %v1265, 64
          %v1570 = vpop.permute.xlu0 %1569
          %1571 = vrot.lane.b32.xlu0 %v1271, 64
          %v1572 = vpop.permute.xlu0 %1571
          %1573 = vrot.lane.b32.xlu0 %v1275, 64
          %v1574 = vpop.permute.xlu0 %1573
          %1575 = vrot.lane.b32.xlu0 %v1281, 64
          %v1576 = vpop.permute.xlu0 %1575
          %1577 = vrot.lane.b32.xlu0 %v1285, 64
          %v1578 = vpop.permute.xlu0 %1577
          %1579 = vrot.lane.b32.xlu0 %v1291, 64
          %v1580 = vpop.permute.xlu0 %1579
          %1581 = vrot.lane.b32.xlu0 %v1295, 64
          %v1582 = vpop.permute.xlu0 %1581
          %1583 = vrot.lane.b32.xlu0 %v1301, 64
          %v1584 = vpop.permute.xlu0 %1583
          %1585 = vrot.lane.b32.xlu0 %v1305, 64
          %v1586 = vpop.permute.xlu0 %1585
          %1587 = vrot.lane.b32.xlu0 %v1311, 64
          %v1588 = vpop.permute.xlu0 %1587
          %1589 = vrot.lane.b32.xlu0 %v1315, 64
          %v1590 = vpop.permute.xlu0 %1589
          %1591 = vrot.lane.b32.xlu0 %v1321, 64
          %v1592 = vpop.permute.xlu0 %1591
          %1593 = vrot.lane.b32.xlu0 %v1325, 64
          %v1594 = vpop.permute.xlu0 %1593
          %1595 = vrot.lane.b32.xlu0 %v1331, 64
          %v1596 = vpop.permute.xlu0 %1595
          %1597 = vrot.lane.b32.xlu0 %v1335, 64
          %v1598 = vpop.permute.xlu0 %1597
          %v1599 = vmul.f32 %v1021, %v1343
          %v1600 = vmul.f32 %v1025, %v1344
          %v1601 = vmul.f32 %v1031, %v1345
          %v1602 = vmul.f32 %v1035, %v1346
          %v1603 = vmul.f32 %v1041, %v1347
          %v1604 = vmul.f32 %v1045, %v1348
          %v1605 = vmul.f32 %v1051, %v1349
          %v1606 = vmul.f32 %v1055, %v1350
          %v1607 = vmul.f32 %v1061, %v1351
          %v1608 = vmul.f32 %v1065, %v1352
          %v1609 = vmul.f32 %v1071, %v1353
          %v1610 = vmul.f32 %v1075, %v1354
          %v1611 = vmul.f32 %v1081, %v1355
          %v1612 = vmul.f32 %v1085, %v1356
          %v1613 = vmul.f32 %v1091, %v1357
          %v1614 = vmul.f32 %v1095, %v1358
          %v1615 = vmul.f32 %v1101, %v1359
          %v1616 = vmul.f32 %v1105, %v1360
          %v1617 = vmul.f32 %v1111, %v1361
          %v1618 = vmul.f32 %v1115, %v1362
          %v1619 = vmul.f32 %v1121, %v1363
          %v1620 = vmul.f32 %v1125, %v1364
          %v1621 = vmul.f32 %v1131, %v1365
          %v1622 = vmul.f32 %v1135, %v1366
          %v1623 = vmul.f32 %v1141, %v1367
          %v1624 = vmul.f32 %v1145, %v1368
          %v1625 = vmul.f32 %v1151, %v1369
          %v1626 = vmul.f32 %v1155, %v1370
          %v1627 = vmul.f32 %v1161, %v1371
          %v1628 = vmul.f32 %v1165, %v1372
          %v1629 = vmul.f32 %v1171, %v1373
          %v1630 = vmul.f32 %v1175, %v1374
          %v1631 = vmul.f32 %v1181, %v1375
          %v1632 = vmul.f32 %v1185, %v1376
          %v1633 = vmul.f32 %v1191, %v1377
          %v1634 = vmul.f32 %v1195, %v1378
          %v1635 = vmul.f32 %v1201, %v1379
          %v1636 = vmul.f32 %v1205, %v1380
          %v1637 = vmul.f32 %v1211, %v1381
          %v1638 = vmul.f32 %v1215, %v1382
          %v1639 = vmul.f32 %v1221, %v1383
          %v1640 = vmul.f32 %v1225, %v1384
          %v1641 = vmul.f32 %v1231, %v1385
          %v1642 = vmul.f32 %v1235, %v1386
          %v1643 = vmul.f32 %v1241, %v1387
          %v1644 = vmul.f32 %v1245, %v1388
          %v1645 = vmul.f32 %v1251, %v1389
          %v1646 = vmul.f32 %v1255, %v1390
          %v1647 = vmul.f32 %v1261, %v1391
          %v1648 = vmul.f32 %v1265, %v1392
          %v1649 = vmul.f32 %v1271, %v1393
          %v1650 = vmul.f32 %v1275, %v1394
          %v1651 = vmul.f32 %v1281, %v1395
          %v1652 = vmul.f32 %v1285, %v1396
          %v1653 = vmul.f32 %v1291, %v1397
          %v1654 = vmul.f32 %v1295, %v1398
          %v1655 = vmul.f32 %v1301, %v1399
          %v1656 = vmul.f32 %v1305, %v1400
          %v1657 = vmul.f32 %v1311, %v1401
          %v1658 = vmul.f32 %v1315, %v1402
          %v1659 = vmul.f32 %v1321, %v1403
          %v1660 = vmul.f32 %v1325, %v1404
          %v1661 = vmul.f32 %v1331, %v1405
          %v1662 = vmul.f32 %v1335, %v1406
          %v1663 = vmul.f32 %v1472, %v1407
          %v1664 = vmul.f32 %v1474, %v1408
          %v1665 = vmul.f32 %v1476, %v1409
          %v1666 = vmul.f32 %v1478, %v1410
          %v1667 = vmul.f32 %v1480, %v1411
          %v1668 = vmul.f32 %v1482, %v1412
          %v1669 = vmul.f32 %v1484, %v1413
          %v1670 = vmul.f32 %v1486, %v1414
          %v1671 = vmul.f32 %v1488, %v1415
          %v1672 = vmul.f32 %v1490, %v1416
          %v1673 = vmul.f32 %v1492, %v1417
          %v1674 = vmul.f32 %v1494, %v1418
          %v1675 = vmul.f32 %v1496, %v1419
          %v1676 = vmul.f32 %v1498, %v1420
          %v1677 = vmul.f32 %v1500, %v1421
          %v1678 = vmul.f32 %v1502, %v1422
          %v1679 = vmul.f32 %v1504, %v1423
          %v1680 = vmul.f32 %v1506, %v1424
          %v1681 = vmul.f32 %v1508, %v1425
          %v1682 = vmul.f32 %v1510, %v1426
          %v1683 = vmul.f32 %v1512, %v1427
          %v1684 = vmul.f32 %v1514, %v1428
          %v1685 = vmul.f32 %v1516, %v1429
          %v1686 = vmul.f32 %v1518, %v1430
          %v1687 = vmul.f32 %v1520, %v1431
          %v1688 = vmul.f32 %v1522, %v1432
          %v1689 = vmul.f32 %v1524, %v1433
          %v1690 = vmul.f32 %v1526, %v1434
          %v1691 = vmul.f32 %v1528, %v1435
          %v1692 = vmul.f32 %v1530, %v1436
          %v1693 = vmul.f32 %v1532, %v1437
          %v1694 = vmul.f32 %v1534, %v1438
          %v1695 = vmul.f32 %v1536, %v1439
          %v1696 = vmul.f32 %v1538, %v1440
          %v1697 = vmul.f32 %v1540, %v1441
          %v1698 = vmul.f32 %v1542, %v1442
          %v1699 = vmul.f32 %v1544, %v1443
          %v1700 = vmul.f32 %v1546, %v1444
          %v1701 = vmul.f32 %v1548, %v1445
          %v1702 = vmul.f32 %v1550, %v1446
          %v1703 = vmul.f32 %v1552, %v1447
          %v1704 = vmul.f32 %v1554, %v1448
          %v1705 = vmul.f32 %v1556, %v1449
          %v1706 = vmul.f32 %v1558, %v1450
          %v1707 = vmul.f32 %v1560, %v1451
          %v1708 = vmul.f32 %v1562, %v1452
          %v1709 = vmul.f32 %v1564, %v1453
          %v1710 = vmul.f32 %v1566, %v1454
          %v1711 = vmul.f32 %v1568, %v1455
          %v1712 = vmul.f32 %v1570, %v1456
          %v1713 = vmul.f32 %v1572, %v1457
          %v1714 = vmul.f32 %v1574, %v1458
          %v1715 = vmul.f32 %v1576, %v1459
          %v1716 = vmul.f32 %v1578, %v1460
          %v1717 = vmul.f32 %v1580, %v1461
          %v1718 = vmul.f32 %v1582, %v1462
          %v1719 = vmul.f32 %v1584, %v1463
          %v1720 = vmul.f32 %v1586, %v1464
          %v1721 = vmul.f32 %v1588, %v1465
          %v1722 = vmul.f32 %v1590, %v1466
          %v1723 = vmul.f32 %v1592, %v1467
          %v1724 = vmul.f32 %v1594, %v1468
          %v1725 = vmul.f32 %v1596, %v1469
          %v1726 = vmul.f32 %v1598, %v1470
          %v1727 = vadd.f32 %v1599, %v1663
          %v1728 = vadd.f32 %v1600, %v1664
          %v1729 = vadd.f32 %v1601, %v1665
          %v1730 = vadd.f32 %v1602, %v1666
          %v1731 = vadd.f32 %v1603, %v1667
          %v1732 = vadd.f32 %v1604, %v1668
          %v1733 = vadd.f32 %v1605, %v1669
          %v1734 = vadd.f32 %v1606, %v1670
          %v1735 = vadd.f32 %v1607, %v1671
          %v1736 = vadd.f32 %v1608, %v1672
          %v1737 = vadd.f32 %v1609, %v1673
          %v1738 = vadd.f32 %v1610, %v1674
          %v1739 = vadd.f32 %v1611, %v1675
          %v1740 = vadd.f32 %v1612, %v1676
          %v1741 = vadd.f32 %v1613, %v1677
          %v1742 = vadd.f32 %v1614, %v1678
          %v1743 = vadd.f32 %v1615, %v1679
          %v1744 = vadd.f32 %v1616, %v1680
          %v1745 = vadd.f32 %v1617, %v1681
          %v1746 = vadd.f32 %v1618, %v1682
          %v1747 = vadd.f32 %v1619, %v1683
          %v1748 = vadd.f32 %v1620, %v1684
          %v1749 = vadd.f32 %v1621, %v1685
          %v1750 = vadd.f32 %v1622, %v1686
          %v1751 = vadd.f32 %v1623, %v1687
          %v1752 = vadd.f32 %v1624, %v1688
          %v1753 = vadd.f32 %v1625, %v1689
          %v1754 = vadd.f32 %v1626, %v1690
          %v1755 = vadd.f32 %v1627, %v1691
          %v1756 = vadd.f32 %v1628, %v1692
          %v1757 = vadd.f32 %v1629, %v1693
          %v1758 = vadd.f32 %v1630, %v1694
          %v1759 = vadd.f32 %v1631, %v1695
          %v1760 = vadd.f32 %v1632, %v1696
          %v1761 = vadd.f32 %v1633, %v1697
          %v1762 = vadd.f32 %v1634, %v1698
          %v1763 = vadd.f32 %v1635, %v1699
          %v1764 = vadd.f32 %v1636, %v1700
          %v1765 = vadd.f32 %v1637, %v1701
          %v1766 = vadd.f32 %v1638, %v1702
          %v1767 = vadd.f32 %v1639, %v1703
          %v1768 = vadd.f32 %v1640, %v1704
          %v1769 = vadd.f32 %v1641, %v1705
          %v1770 = vadd.f32 %v1642, %v1706
          %v1771 = vadd.f32 %v1643, %v1707
          %v1772 = vadd.f32 %v1644, %v1708
          %v1773 = vadd.f32 %v1645, %v1709
          %v1774 = vadd.f32 %v1646, %v1710
          %v1775 = vadd.f32 %v1647, %v1711
          %v1776 = vadd.f32 %v1648, %v1712
          %v1777 = vadd.f32 %v1649, %v1713
          %v1778 = vadd.f32 %v1650, %v1714
          %v1779 = vadd.f32 %v1651, %v1715
          %v1780 = vadd.f32 %v1652, %v1716
          %v1781 = vadd.f32 %v1653, %v1717
          %v1782 = vadd.f32 %v1654, %v1718
          %v1783 = vadd.f32 %v1655, %v1719
          %v1784 = vadd.f32 %v1656, %v1720
          %v1785 = vadd.f32 %v1657, %v1721
          %v1786 = vadd.f32 %v1658, %v1722
          %v1787 = vadd.f32 %v1659, %v1723
          %v1788 = vadd.f32 %v1660, %v1724
          %v1789 = vadd.f32 %v1661, %v1725
          %v1790 = vadd.f32 %v1662, %v1726
          %1791 = vrot.lane.b32.xlu0 %v1023, 64
          %v1792 = vpop.permute.xlu0 %1791
          %1793 = vrot.lane.b32.xlu0 %v1027, 64
          %v1794 = vpop.permute.xlu0 %1793
          %1795 = vrot.lane.b32.xlu0 %v1033, 64
          %v1796 = vpop.permute.xlu0 %1795
          %1797 = vrot.lane.b32.xlu0 %v1037, 64
          %v1798 = vpop.permute.xlu0 %1797
          %1799 = vrot.lane.b32.xlu0 %v1043, 64
          %v1800 = vpop.permute.xlu0 %1799
          %1801 = vrot.lane.b32.xlu0 %v1047, 64
          %v1802 = vpop.permute.xlu0 %1801
          %1803 = vrot.lane.b32.xlu0 %v1053, 64
          %v1804 = vpop.permute.xlu0 %1803
          %1805 = vrot.lane.b32.xlu0 %v1057, 64
          %v1806 = vpop.permute.xlu0 %1805
          %1807 = vrot.lane.b32.xlu0 %v1063, 64
          %v1808 = vpop.permute.xlu0 %1807
          %1809 = vrot.lane.b32.xlu0 %v1067, 64
          %v1810 = vpop.permute.xlu0 %1809
          %1811 = vrot.lane.b32.xlu0 %v1073, 64
          %v1812 = vpop.permute.xlu0 %1811
          %1813 = vrot.lane.b32.xlu0 %v1077, 64
          %v1814 = vpop.permute.xlu0 %1813
          %1815 = vrot.lane.b32.xlu0 %v1083, 64
          %v1816 = vpop.permute.xlu0 %1815
          %1817 = vrot.lane.b32.xlu0 %v1087, 64
          %v1818 = vpop.permute.xlu0 %1817
          %1819 = vrot.lane.b32.xlu0 %v1093, 64
          %v1820 = vpop.permute.xlu0 %1819
          %1821 = vrot.lane.b32.xlu0 %v1097, 64
          %v1822 = vpop.permute.xlu0 %1821
          %1823 = vrot.lane.b32.xlu0 %v1103, 64
          %v1824 = vpop.permute.xlu0 %1823
          %1825 = vrot.lane.b32.xlu0 %v1107, 64
          %v1826 = vpop.permute.xlu0 %1825
          %1827 = vrot.lane.b32.xlu0 %v1113, 64
          %v1828 = vpop.permute.xlu0 %1827
          %1829 = vrot.lane.b32.xlu0 %v1117, 64
          %v1830 = vpop.permute.xlu0 %1829
          %1831 = vrot.lane.b32.xlu0 %v1123, 64
          %v1832 = vpop.permute.xlu0 %1831
          %1833 = vrot.lane.b32.xlu0 %v1127, 64
          %v1834 = vpop.permute.xlu0 %1833
          %1835 = vrot.lane.b32.xlu0 %v1133, 64
          %v1836 = vpop.permute.xlu0 %1835
          %1837 = vrot.lane.b32.xlu0 %v1137, 64
          %v1838 = vpop.permute.xlu0 %1837
          %1839 = vrot.lane.b32.xlu0 %v1143, 64
          %v1840 = vpop.permute.xlu0 %1839
          %1841 = vrot.lane.b32.xlu0 %v1147, 64
          %v1842 = vpop.permute.xlu0 %1841
          %1843 = vrot.lane.b32.xlu0 %v1153, 64
          %v1844 = vpop.permute.xlu0 %1843
          %1845 = vrot.lane.b32.xlu0 %v1157, 64
          %v1846 = vpop.permute.xlu0 %1845
          %1847 = vrot.lane.b32.xlu0 %v1163, 64
          %v1848 = vpop.permute.xlu0 %1847
          %1849 = vrot.lane.b32.xlu0 %v1167, 64
          %v1850 = vpop.permute.xlu0 %1849
          %1851 = vrot.lane.b32.xlu0 %v1173, 64
          %v1852 = vpop.permute.xlu0 %1851
          %1853 = vrot.lane.b32.xlu0 %v1177, 64
          %v1854 = vpop.permute.xlu0 %1853
          %1855 = vrot.lane.b32.xlu0 %v1183, 64
          %v1856 = vpop.permute.xlu0 %1855
          %1857 = vrot.lane.b32.xlu0 %v1187, 64
          %v1858 = vpop.permute.xlu0 %1857
          %1859 = vrot.lane.b32.xlu0 %v1193, 64
          %v1860 = vpop.permute.xlu0 %1859
          %1861 = vrot.lane.b32.xlu0 %v1197, 64
          %v1862 = vpop.permute.xlu0 %1861
          %1863 = vrot.lane.b32.xlu0 %v1203, 64
          %v1864 = vpop.permute.xlu0 %1863
          %1865 = vrot.lane.b32.xlu0 %v1207, 64
          %v1866 = vpop.permute.xlu0 %1865
          %1867 = vrot.lane.b32.xlu0 %v1213, 64
          %v1868 = vpop.permute.xlu0 %1867
          %1869 = vrot.lane.b32.xlu0 %v1217, 64
          %v1870 = vpop.permute.xlu0 %1869
          %1871 = vrot.lane.b32.xlu0 %v1223, 64
          %v1872 = vpop.permute.xlu0 %1871
          %1873 = vrot.lane.b32.xlu0 %v1227, 64
          %v1874 = vpop.permute.xlu0 %1873
          %1875 = vrot.lane.b32.xlu0 %v1233, 64
          %v1876 = vpop.permute.xlu0 %1875
          %1877 = vrot.lane.b32.xlu0 %v1237, 64
          %v1878 = vpop.permute.xlu0 %1877
          %1879 = vrot.lane.b32.xlu0 %v1243, 64
          %v1880 = vpop.permute.xlu0 %1879
          %1881 = vrot.lane.b32.xlu0 %v1247, 64
          %v1882 = vpop.permute.xlu0 %1881
          %1883 = vrot.lane.b32.xlu0 %v1253, 64
          %v1884 = vpop.permute.xlu0 %1883
          %1885 = vrot.lane.b32.xlu0 %v1257, 64
          %v1886 = vpop.permute.xlu0 %1885
          %1887 = vrot.lane.b32.xlu0 %v1263, 64
          %v1888 = vpop.permute.xlu0 %1887
          %1889 = vrot.lane.b32.xlu0 %v1267, 64
          %v1890 = vpop.permute.xlu0 %1889
          %1891 = vrot.lane.b32.xlu0 %v1273, 64
          %v1892 = vpop.permute.xlu0 %1891
          %1893 = vrot.lane.b32.xlu0 %v1277, 64
          %v1894 = vpop.permute.xlu0 %1893
          %1895 = vrot.lane.b32.xlu0 %v1283, 64
          %v1896 = vpop.permute.xlu0 %1895
          %1897 = vrot.lane.b32.xlu0 %v1287, 64
          %v1898 = vpop.permute.xlu0 %1897
          %1899 = vrot.lane.b32.xlu0 %v1293, 64
          %v1900 = vpop.permute.xlu0 %1899
          %1901 = vrot.lane.b32.xlu0 %v1297, 64
          %v1902 = vpop.permute.xlu0 %1901
          %1903 = vrot.lane.b32.xlu0 %v1303, 64
          %v1904 = vpop.permute.xlu0 %1903
          %1905 = vrot.lane.b32.xlu0 %v1307, 64
          %v1906 = vpop.permute.xlu0 %1905
          %1907 = vrot.lane.b32.xlu0 %v1313, 64
          %v1908 = vpop.permute.xlu0 %1907
          %1909 = vrot.lane.b32.xlu0 %v1317, 64
          %v1910 = vpop.permute.xlu0 %1909
          %1911 = vrot.lane.b32.xlu0 %v1323, 64
          %v1912 = vpop.permute.xlu0 %1911
          %1913 = vrot.lane.b32.xlu0 %v1327, 64
          %v1914 = vpop.permute.xlu0 %1913
          %1915 = vrot.lane.b32.xlu0 %v1333, 64
          %v1916 = vpop.permute.xlu0 %1915
          %1917 = vrot.lane.b32.xlu0 %v1337, 64
          %v1918 = vpop.permute.xlu0 %1917
          %v1919 = vmul.f32 %v1023, %v1343
          %v1920 = vmul.f32 %v1027, %v1344
          %v1921 = vmul.f32 %v1033, %v1345
          %v1922 = vmul.f32 %v1037, %v1346
          %v1923 = vmul.f32 %v1043, %v1347
          %v1924 = vmul.f32 %v1047, %v1348
          %v1925 = vmul.f32 %v1053, %v1349
          %v1926 = vmul.f32 %v1057, %v1350
          %v1927 = vmul.f32 %v1063, %v1351
          %v1928 = vmul.f32 %v1067, %v1352
          %v1929 = vmul.f32 %v1073, %v1353
          %v1930 = vmul.f32 %v1077, %v1354
          %v1931 = vmul.f32 %v1083, %v1355
          %v1932 = vmul.f32 %v1087, %v1356
          %v1933 = vmul.f32 %v1093, %v1357
          %v1934 = vmul.f32 %v1097, %v1358
          %v1935 = vmul.f32 %v1103, %v1359
          %v1936 = vmul.f32 %v1107, %v1360
          %v1937 = vmul.f32 %v1113, %v1361
          %v1938 = vmul.f32 %v1117, %v1362
          %v1939 = vmul.f32 %v1123, %v1363
          %v1940 = vmul.f32 %v1127, %v1364
          %v1941 = vmul.f32 %v1133, %v1365
          %v1942 = vmul.f32 %v1137, %v1366
          %v1943 = vmul.f32 %v1143, %v1367
          %v1944 = vmul.f32 %v1147, %v1368
          %v1945 = vmul.f32 %v1153, %v1369
          %v1946 = vmul.f32 %v1157, %v1370
          %v1947 = vmul.f32 %v1163, %v1371
          %v1948 = vmul.f32 %v1167, %v1372
          %v1949 = vmul.f32 %v1173, %v1373
          %v1950 = vmul.f32 %v1177, %v1374
          %v1951 = vmul.f32 %v1183, %v1375
          %v1952 = vmul.f32 %v1187, %v1376
          %v1953 = vmul.f32 %v1193, %v1377
          %v1954 = vmul.f32 %v1197, %v1378
          %v1955 = vmul.f32 %v1203, %v1379
          %v1956 = vmul.f32 %v1207, %v1380
          %v1957 = vmul.f32 %v1213, %v1381
          %v1958 = vmul.f32 %v1217, %v1382
          %v1959 = vmul.f32 %v1223, %v1383
          %v1960 = vmul.f32 %v1227, %v1384
          %v1961 = vmul.f32 %v1233, %v1385
          %v1962 = vmul.f32 %v1237, %v1386
          %v1963 = vmul.f32 %v1243, %v1387
          %v1964 = vmul.f32 %v1247, %v1388
          %v1965 = vmul.f32 %v1253, %v1389
          %v1966 = vmul.f32 %v1257, %v1390
          %v1967 = vmul.f32 %v1263, %v1391
          %v1968 = vmul.f32 %v1267, %v1392
          %v1969 = vmul.f32 %v1273, %v1393
          %v1970 = vmul.f32 %v1277, %v1394
          %v1971 = vmul.f32 %v1283, %v1395
          %v1972 = vmul.f32 %v1287, %v1396
          %v1973 = vmul.f32 %v1293, %v1397
          %v1974 = vmul.f32 %v1297, %v1398
          %v1975 = vmul.f32 %v1303, %v1399
          %v1976 = vmul.f32 %v1307, %v1400
          %v1977 = vmul.f32 %v1313, %v1401
          %v1978 = vmul.f32 %v1317, %v1402
          %v1979 = vmul.f32 %v1323, %v1403
          %v1980 = vmul.f32 %v1327, %v1404
          %v1981 = vmul.f32 %v1333, %v1405
          %v1982 = vmul.f32 %v1337, %v1406
          %v1983 = vmul.f32 %v1792, %v1407
          %v1984 = vmul.f32 %v1794, %v1408
          %v1985 = vmul.f32 %v1796, %v1409
          %v1986 = vmul.f32 %v1798, %v1410
          %v1987 = vmul.f32 %v1800, %v1411
          %v1988 = vmul.f32 %v1802, %v1412
          %v1989 = vmul.f32 %v1804, %v1413
          %v1990 = vmul.f32 %v1806, %v1414
          %v1991 = vmul.f32 %v1808, %v1415
          %v1992 = vmul.f32 %v1810, %v1416
          %v1993 = vmul.f32 %v1812, %v1417
          %v1994 = vmul.f32 %v1814, %v1418
          %v1995 = vmul.f32 %v1816, %v1419
          %v1996 = vmul.f32 %v1818, %v1420
          %v1997 = vmul.f32 %v1820, %v1421
          %v1998 = vmul.f32 %v1822, %v1422
          %v1999 = vmul.f32 %v1824, %v1423
          %v2000 = vmul.f32 %v1826, %v1424
          %v2001 = vmul.f32 %v1828, %v1425
          %v2002 = vmul.f32 %v1830, %v1426
          %v2003 = vmul.f32 %v1832, %v1427
          %v2004 = vmul.f32 %v1834, %v1428
          %v2005 = vmul.f32 %v1836, %v1429
          %v2006 = vmul.f32 %v1838, %v1430
          %v2007 = vmul.f32 %v1840, %v1431
          %v2008 = vmul.f32 %v1842, %v1432
          %v2009 = vmul.f32 %v1844, %v1433
          %v2010 = vmul.f32 %v1846, %v1434
          %v2011 = vmul.f32 %v1848, %v1435
          %v2012 = vmul.f32 %v1850, %v1436
          %v2013 = vmul.f32 %v1852, %v1437
          %v2014 = vmul.f32 %v1854, %v1438
          %v2015 = vmul.f32 %v1856, %v1439
          %v2016 = vmul.f32 %v1858, %v1440
          %v2017 = vmul.f32 %v1860, %v1441
          %v2018 = vmul.f32 %v1862, %v1442
          %v2019 = vmul.f32 %v1864, %v1443
          %v2020 = vmul.f32 %v1866, %v1444
          %v2021 = vmul.f32 %v1868, %v1445
          %v2022 = vmul.f32 %v1870, %v1446
          %v2023 = vmul.f32 %v1872, %v1447
          %v2024 = vmul.f32 %v1874, %v1448
          %v2025 = vmul.f32 %v1876, %v1449
          %v2026 = vmul.f32 %v1878, %v1450
          %v2027 = vmul.f32 %v1880, %v1451
          %v2028 = vmul.f32 %v1882, %v1452
          %v2029 = vmul.f32 %v1884, %v1453
          %v2030 = vmul.f32 %v1886, %v1454
          %v2031 = vmul.f32 %v1888, %v1455
          %v2032 = vmul.f32 %v1890, %v1456
          %v2033 = vmul.f32 %v1892, %v1457
          %v2034 = vmul.f32 %v1894, %v1458
          %v2035 = vmul.f32 %v1896, %v1459
          %v2036 = vmul.f32 %v1898, %v1460
          %v2037 = vmul.f32 %v1900, %v1461
          %v2038 = vmul.f32 %v1902, %v1462
          %v2039 = vmul.f32 %v1904, %v1463
          %v2040 = vmul.f32 %v1906, %v1464
          %v2041 = vmul.f32 %v1908, %v1465
          %v2042 = vmul.f32 %v1910, %v1466
          %v2043 = vmul.f32 %v1912, %v1467
          %v2044 = vmul.f32 %v1914, %v1468
          %v2045 = vmul.f32 %v1916, %v1469
          %v2046 = vmul.f32 %v1918, %v1470
          %v2047 = vadd.f32 %v1919, %v1983
          %v2048 = vadd.f32 %v1920, %v1984
          %v2049 = vadd.f32 %v1921, %v1985
          %v2050 = vadd.f32 %v1922, %v1986
          %v2051 = vadd.f32 %v1923, %v1987
          %v2052 = vadd.f32 %v1924, %v1988
          %v2053 = vadd.f32 %v1925, %v1989
          %v2054 = vadd.f32 %v1926, %v1990
          %v2055 = vadd.f32 %v1927, %v1991
          %v2056 = vadd.f32 %v1928, %v1992
          %v2057 = vadd.f32 %v1929, %v1993
          %v2058 = vadd.f32 %v1930, %v1994
          %v2059 = vadd.f32 %v1931, %v1995
          %v2060 = vadd.f32 %v1932, %v1996
          %v2061 = vadd.f32 %v1933, %v1997
          %v2062 = vadd.f32 %v1934, %v1998
          %v2063 = vadd.f32 %v1935, %v1999
          %v2064 = vadd.f32 %v1936, %v2000
          %v2065 = vadd.f32 %v1937, %v2001
          %v2066 = vadd.f32 %v1938, %v2002
          %v2067 = vadd.f32 %v1939, %v2003
          %v2068 = vadd.f32 %v1940, %v2004
          %v2069 = vadd.f32 %v1941, %v2005
          %v2070 = vadd.f32 %v1942, %v2006
          %v2071 = vadd.f32 %v1943, %v2007
          %v2072 = vadd.f32 %v1944, %v2008
          %v2073 = vadd.f32 %v1945, %v2009
          %v2074 = vadd.f32 %v1946, %v2010
          %v2075 = vadd.f32 %v1947, %v2011
          %v2076 = vadd.f32 %v1948, %v2012
          %v2077 = vadd.f32 %v1949, %v2013
          %v2078 = vadd.f32 %v1950, %v2014
          %v2079 = vadd.f32 %v1951, %v2015
          %v2080 = vadd.f32 %v1952, %v2016
          %v2081 = vadd.f32 %v1953, %v2017
          %v2082 = vadd.f32 %v1954, %v2018
          %v2083 = vadd.f32 %v1955, %v2019
          %v2084 = vadd.f32 %v1956, %v2020
          %v2085 = vadd.f32 %v1957, %v2021
          %v2086 = vadd.f32 %v1958, %v2022
          %v2087 = vadd.f32 %v1959, %v2023
          %v2088 = vadd.f32 %v1960, %v2024
          %v2089 = vadd.f32 %v1961, %v2025
          %v2090 = vadd.f32 %v1962, %v2026
          %v2091 = vadd.f32 %v1963, %v2027
          %v2092 = vadd.f32 %v1964, %v2028
          %v2093 = vadd.f32 %v1965, %v2029
          %v2094 = vadd.f32 %v1966, %v2030
          %v2095 = vadd.f32 %v1967, %v2031
          %v2096 = vadd.f32 %v1968, %v2032
          %v2097 = vadd.f32 %v1969, %v2033
          %v2098 = vadd.f32 %v1970, %v2034
          %v2099 = vadd.f32 %v1971, %v2035
          %v2100 = vadd.f32 %v1972, %v2036
          %v2101 = vadd.f32 %v1973, %v2037
          %v2102 = vadd.f32 %v1974, %v2038
          %v2103 = vadd.f32 %v1975, %v2039
          %v2104 = vadd.f32 %v1976, %v2040
          %v2105 = vadd.f32 %v1977, %v2041
          %v2106 = vadd.f32 %v1978, %v2042
          %v2107 = vadd.f32 %v1979, %v2043
          %v2108 = vadd.f32 %v1980, %v2044
          %v2109 = vadd.f32 %v1981, %v2045
          %v2110 = vadd.f32 %v1982, %v2046
          %v2111 = vpack.c.bf16 %v1728, %v1727
          %v2112 = vpack.c.bf16 %v2048, %v2047
          %v2113 = vpack.c.bf16 %v1730, %v1729
          %v2114 = vpack.c.bf16 %v2050, %v2049
          %v2115 = vpack.c.bf16 %v1732, %v1731
          %v2116 = vpack.c.bf16 %v2052, %v2051
          %v2117 = vpack.c.bf16 %v1734, %v1733
          %v2118 = vpack.c.bf16 %v2054, %v2053
          %v2119 = vpack.c.bf16 %v1736, %v1735
          %v2120 = vpack.c.bf16 %v2056, %v2055
          %v2121 = vpack.c.bf16 %v1738, %v1737
          %v2122 = vpack.c.bf16 %v2058, %v2057
          %v2123 = vpack.c.bf16 %v1740, %v1739
          %v2124 = vpack.c.bf16 %v2060, %v2059
          %v2125 = vpack.c.bf16 %v1742, %v1741
          %v2126 = vpack.c.bf16 %v2062, %v2061
          %v2127 = vpack.c.bf16 %v1744, %v1743
          %v2128 = vpack.c.bf16 %v2064, %v2063
          %v2129 = vpack.c.bf16 %v1746, %v1745
          %v2130 = vpack.c.bf16 %v2066, %v2065
          %v2131 = vpack.c.bf16 %v1748, %v1747
          %v2132 = vpack.c.bf16 %v2068, %v2067
          %v2133 = vpack.c.bf16 %v1750, %v1749
          %v2134 = vpack.c.bf16 %v2070, %v2069
          %v2135 = vpack.c.bf16 %v1752, %v1751
          %v2136 = vpack.c.bf16 %v2072, %v2071
          %v2137 = vpack.c.bf16 %v1754, %v1753
          %v2138 = vpack.c.bf16 %v2074, %v2073
          %v2139 = vpack.c.bf16 %v1756, %v1755
          %v2140 = vpack.c.bf16 %v2076, %v2075
          %v2141 = vpack.c.bf16 %v1758, %v1757
          %v2142 = vpack.c.bf16 %v2078, %v2077
          %v2143 = vpack.c.bf16 %v1760, %v1759
          %v2144 = vpack.c.bf16 %v2080, %v2079
          %v2145 = vpack.c.bf16 %v1762, %v1761
          %v2146 = vpack.c.bf16 %v2082, %v2081
          %v2147 = vpack.c.bf16 %v1764, %v1763
          %v2148 = vpack.c.bf16 %v2084, %v2083
          %v2149 = vpack.c.bf16 %v1766, %v1765
          %v2150 = vpack.c.bf16 %v2086, %v2085
          %v2151 = vpack.c.bf16 %v1768, %v1767
          %v2152 = vpack.c.bf16 %v2088, %v2087
          %v2153 = vpack.c.bf16 %v1770, %v1769
          %v2154 = vpack.c.bf16 %v2090, %v2089
          %v2155 = vpack.c.bf16 %v1772, %v1771
          %v2156 = vpack.c.bf16 %v2092, %v2091
          %v2157 = vpack.c.bf16 %v1774, %v1773
          %v2158 = vpack.c.bf16 %v2094, %v2093
          %v2159 = vpack.c.bf16 %v1776, %v1775
          %v2160 = vpack.c.bf16 %v2096, %v2095
          %v2161 = vpack.c.bf16 %v1778, %v1777
          %v2162 = vpack.c.bf16 %v2098, %v2097
          %v2163 = vpack.c.bf16 %v1780, %v1779
          %v2164 = vpack.c.bf16 %v2100, %v2099
          %v2165 = vpack.c.bf16 %v1782, %v1781
          %v2166 = vpack.c.bf16 %v2102, %v2101
          %v2167 = vpack.c.bf16 %v1784, %v1783
          %v2168 = vpack.c.bf16 %v2104, %v2103
          %v2169 = vpack.c.bf16 %v1786, %v1785
          %v2170 = vpack.c.bf16 %v2106, %v2105
          %v2171 = vpack.c.bf16 %v1788, %v1787
          %v2172 = vpack.c.bf16 %v2108, %v2107
          %v2173 = vpack.c.bf16 %v1790, %v1789
          %v2174 = vpack.c.bf16 %v2110, %v2109
          %v2239 = vunpack.c.l.b16 %v2111
          %v2240 = vunpack.c.l.b16 %v2112
          %v2241 = vunpack.c.h.b16 %v2111
          %v2242 = vunpack.c.h.b16 %v2112
          %v2243 = vunpack.c.l.b16 %v2113
          %v2244 = vunpack.c.l.b16 %v2114
          %v2245 = vunpack.c.h.b16 %v2113
          %v2246 = vunpack.c.h.b16 %v2114
          %v2247 = vunpack.c.l.b16 %v2115
          %v2248 = vunpack.c.l.b16 %v2116
          %v2249 = vunpack.c.h.b16 %v2115
          %v2250 = vunpack.c.h.b16 %v2116
          %v2251 = vunpack.c.l.b16 %v2117
          %v2252 = vunpack.c.l.b16 %v2118
          %v2253 = vunpack.c.h.b16 %v2117
          %v2254 = vunpack.c.h.b16 %v2118
          %v2255 = vunpack.c.l.b16 %v2119
          %v2256 = vunpack.c.l.b16 %v2120
          %v2257 = vunpack.c.h.b16 %v2119
          %v2258 = vunpack.c.h.b16 %v2120
          %v2259 = vunpack.c.l.b16 %v2121
          %v2260 = vunpack.c.l.b16 %v2122
          %v2261 = vunpack.c.h.b16 %v2121
          %v2262 = vunpack.c.h.b16 %v2122
          %v2263 = vunpack.c.l.b16 %v2123
          %v2264 = vunpack.c.l.b16 %v2124
          %v2265 = vunpack.c.h.b16 %v2123
          %v2266 = vunpack.c.h.b16 %v2124
          %v2267 = vunpack.c.l.b16 %v2125
          %v2268 = vunpack.c.l.b16 %v2126
          %v2269 = vunpack.c.h.b16 %v2125
          %v2270 = vunpack.c.h.b16 %v2126
          %v2271 = vunpack.c.l.b16 %v2127
          %v2272 = vunpack.c.l.b16 %v2128
          %v2273 = vunpack.c.h.b16 %v2127
          %v2274 = vunpack.c.h.b16 %v2128
          %v2275 = vunpack.c.l.b16 %v2129
          %v2276 = vunpack.c.l.b16 %v2130
          %v2277 = vunpack.c.h.b16 %v2129
          %v2278 = vunpack.c.h.b16 %v2130
          %v2279 = vunpack.c.l.b16 %v2131
          %v2280 = vunpack.c.l.b16 %v2132
          %v2281 = vunpack.c.h.b16 %v2131
          %v2282 = vunpack.c.h.b16 %v2132
          %v2283 = vunpack.c.l.b16 %v2133
          %v2284 = vunpack.c.l.b16 %v2134
          %v2285 = vunpack.c.h.b16 %v2133
          %v2286 = vunpack.c.h.b16 %v2134
          %v2287 = vunpack.c.l.b16 %v2135
          %v2288 = vunpack.c.l.b16 %v2136
          %v2289 = vunpack.c.h.b16 %v2135
          %v2290 = vunpack.c.h.b16 %v2136
          %v2291 = vunpack.c.l.b16 %v2137
          %v2292 = vunpack.c.l.b16 %v2138
          %v2293 = vunpack.c.h.b16 %v2137
          %v2294 = vunpack.c.h.b16 %v2138
          %v2295 = vunpack.c.l.b16 %v2139
          %v2296 = vunpack.c.l.b16 %v2140
          %v2297 = vunpack.c.h.b16 %v2139
          %v2298 = vunpack.c.h.b16 %v2140
          %v2299 = vunpack.c.l.b16 %v2141
          %v2300 = vunpack.c.l.b16 %v2142
          %v2301 = vunpack.c.h.b16 %v2141
          %v2302 = vunpack.c.h.b16 %v2142
          %v2303 = vunpack.c.l.b16 %v2143
          %v2304 = vunpack.c.l.b16 %v2144
          %v2305 = vunpack.c.h.b16 %v2143
          %v2306 = vunpack.c.h.b16 %v2144
          %v2307 = vunpack.c.l.b16 %v2145
          %v2308 = vunpack.c.l.b16 %v2146
          %v2309 = vunpack.c.h.b16 %v2145
          %v2310 = vunpack.c.h.b16 %v2146
          %v2311 = vunpack.c.l.b16 %v2147
          %v2312 = vunpack.c.l.b16 %v2148
          %v2313 = vunpack.c.h.b16 %v2147
          %v2314 = vunpack.c.h.b16 %v2148
          %v2315 = vunpack.c.l.b16 %v2149
          %v2316 = vunpack.c.l.b16 %v2150
          %v2317 = vunpack.c.h.b16 %v2149
          %v2318 = vunpack.c.h.b16 %v2150
          %v2319 = vunpack.c.l.b16 %v2151
          %v2320 = vunpack.c.l.b16 %v2152
          %v2321 = vunpack.c.h.b16 %v2151
          %v2322 = vunpack.c.h.b16 %v2152
          %v2323 = vunpack.c.l.b16 %v2153
          %v2324 = vunpack.c.l.b16 %v2154
          %v2325 = vunpack.c.h.b16 %v2153
          %v2326 = vunpack.c.h.b16 %v2154
          %v2327 = vunpack.c.l.b16 %v2155
          %v2328 = vunpack.c.l.b16 %v2156
          %v2329 = vunpack.c.h.b16 %v2155
          %v2330 = vunpack.c.h.b16 %v2156
          %v2331 = vunpack.c.l.b16 %v2157
          %v2332 = vunpack.c.l.b16 %v2158
          %v2333 = vunpack.c.h.b16 %v2157
          %v2334 = vunpack.c.h.b16 %v2158
          %v2335 = vunpack.c.l.b16 %v2159
          %v2336 = vunpack.c.l.b16 %v2160
          %v2337 = vunpack.c.h.b16 %v2159
          %v2338 = vunpack.c.h.b16 %v2160
          %v2339 = vunpack.c.l.b16 %v2161
          %v2340 = vunpack.c.l.b16 %v2162
          %v2341 = vunpack.c.h.b16 %v2161
          %v2342 = vunpack.c.h.b16 %v2162
          %v2343 = vunpack.c.l.b16 %v2163
          %v2344 = vunpack.c.l.b16 %v2164
          %v2345 = vunpack.c.h.b16 %v2163
          %v2346 = vunpack.c.h.b16 %v2164
          %v2347 = vunpack.c.l.b16 %v2165
          %v2348 = vunpack.c.l.b16 %v2166
          %v2349 = vunpack.c.h.b16 %v2165
          %v2350 = vunpack.c.h.b16 %v2166
          %v2351 = vunpack.c.l.b16 %v2167
          %v2352 = vunpack.c.l.b16 %v2168
          %v2353 = vunpack.c.h.b16 %v2167
          %v2354 = vunpack.c.h.b16 %v2168
          %v2355 = vunpack.c.l.b16 %v2169
          %v2356 = vunpack.c.l.b16 %v2170
          %v2357 = vunpack.c.h.b16 %v2169
          %v2358 = vunpack.c.h.b16 %v2170
          %v2359 = vunpack.c.l.b16 %v2171
          %v2360 = vunpack.c.l.b16 %v2172
          %v2361 = vunpack.c.h.b16 %v2171
          %v2362 = vunpack.c.h.b16 %v2172
          %v2363 = vunpack.c.l.b16 %v2173
          %v2364 = vunpack.c.l.b16 %v2174
          %v2365 = vunpack.c.h.b16 %v2173
          %v2366 = vunpack.c.h.b16 %v2174
          %v2367 = vpack.c.b16 %v2240, %v2239
          %v2368 = vpack.c.b16 %v2242, %v2241
          %v2369 = vpack.c.b16 %v2244, %v2243
          %v2370 = vpack.c.b16 %v2246, %v2245
          %v2371 = vpack.c.b16 %v2248, %v2247
          %v2372 = vpack.c.b16 %v2250, %v2249
          %v2373 = vpack.c.b16 %v2252, %v2251
          %v2374 = vpack.c.b16 %v2254, %v2253
          %v2375 = vpack.c.b16 %v2256, %v2255
          %v2376 = vpack.c.b16 %v2258, %v2257
          %v2377 = vpack.c.b16 %v2260, %v2259
          %v2378 = vpack.c.b16 %v2262, %v2261
          %v2379 = vpack.c.b16 %v2264, %v2263
          %v2380 = vpack.c.b16 %v2266, %v2265
          %v2381 = vpack.c.b16 %v2268, %v2267
          %v2382 = vpack.c.b16 %v2270, %v2269
          %v2383 = vpack.c.b16 %v2272, %v2271
          %v2384 = vpack.c.b16 %v2274, %v2273
          %v2385 = vpack.c.b16 %v2276, %v2275
          %v2386 = vpack.c.b16 %v2278, %v2277
          %v2387 = vpack.c.b16 %v2280, %v2279
          %v2388 = vpack.c.b16 %v2282, %v2281
          %v2389 = vpack.c.b16 %v2284, %v2283
          %v2390 = vpack.c.b16 %v2286, %v2285
          %v2391 = vpack.c.b16 %v2288, %v2287
          %v2392 = vpack.c.b16 %v2290, %v2289
          %v2393 = vpack.c.b16 %v2292, %v2291
          %v2394 = vpack.c.b16 %v2294, %v2293
          %v2395 = vpack.c.b16 %v2296, %v2295
          %v2396 = vpack.c.b16 %v2298, %v2297
          %v2397 = vpack.c.b16 %v2300, %v2299
          %v2398 = vpack.c.b16 %v2302, %v2301
          %v2399 = vpack.c.b16 %v2304, %v2303
          %v2400 = vpack.c.b16 %v2306, %v2305
          %v2401 = vpack.c.b16 %v2308, %v2307
          %v2402 = vpack.c.b16 %v2310, %v2309
          %v2403 = vpack.c.b16 %v2312, %v2311
          %v2404 = vpack.c.b16 %v2314, %v2313
          %v2405 = vpack.c.b16 %v2316, %v2315
          %v2406 = vpack.c.b16 %v2318, %v2317
          %v2407 = vpack.c.b16 %v2320, %v2319
          %v2408 = vpack.c.b16 %v2322, %v2321
          %v2409 = vpack.c.b16 %v2324, %v2323
          %v2410 = vpack.c.b16 %v2326, %v2325
          %v2411 = vpack.c.b16 %v2328, %v2327
          %v2412 = vpack.c.b16 %v2330, %v2329
          %v2413 = vpack.c.b16 %v2332, %v2331
          %v2414 = vpack.c.b16 %v2334, %v2333
          %v2415 = vpack.c.b16 %v2336, %v2335
          %v2416 = vpack.c.b16 %v2338, %v2337
          %v2417 = vpack.c.b16 %v2340, %v2339
          %v2418 = vpack.c.b16 %v2342, %v2341
          %v2419 = vpack.c.b16 %v2344, %v2343
          %v2420 = vpack.c.b16 %v2346, %v2345
          %v2421 = vpack.c.b16 %v2348, %v2347
          %v2422 = vpack.c.b16 %v2350, %v2349
          %v2423 = vpack.c.b16 %v2352, %v2351
          %v2424 = vpack.c.b16 %v2354, %v2353
          %v2425 = vpack.c.b16 %v2356, %v2355
          %v2426 = vpack.c.b16 %v2358, %v2357
          %v2427 = vpack.c.b16 %v2360, %v2359
          %v2428 = vpack.c.b16 %v2362, %v2361
          %v2429 = vpack.c.b16 %v2364, %v2363
          %v2430 = vpack.c.b16 %v2366, %v2365
          %2495 = vst [vmem:[%s390] sm:$0xff] %v2367
          %2496 = vst [vmem:[%s390 + $0x8] sm:$0xff] %v2368
          %2497 = vst [vmem:[%s390 + $0x10] sm:$0xff] %v2369
          %2498 = vst [vmem:[%s390 + $0x18] sm:$0xff] %v2370
          %2499 = vst [vmem:[%s390 + $0x20] sm:$0xff] %v2371
          %2500 = vst [vmem:[%s390 + $0x28] sm:$0xff] %v2372
          %2501 = vst [vmem:[%s390 + $0x30] sm:$0xff] %v2373
          %2502 = vst [vmem:[%s390 + $0x38] sm:$0xff] %v2374
          %2503 = vst [vmem:[%s390 + $0x40] sm:$0xff] %v2375
          %2504 = vst [vmem:[%s390 + $0x48] sm:$0xff] %v2376
          %2505 = vst [vmem:[%s390 + $0x50] sm:$0xff] %v2377
          %2506 = vst [vmem:[%s390 + $0x58] sm:$0xff] %v2378
          %2507 = vst [vmem:[%s390 + $0x60] sm:$0xff] %v2379
          %2508 = vst [vmem:[%s390 + $0x68] sm:$0xff] %v2380
          %2509 = vst [vmem:[%s390 + $0x70] sm:$0xff] %v2381
          %2510 = vst [vmem:[%s390 + $0x78] sm:$0xff] %v2382
          %2511 = vst [vmem:[%s390 + $0x80] sm:$0xff] %v2383
          %2512 = vst [vmem:[%s390 + $0x88] sm:$0xff] %v2384
          %2513 = vst [vmem:[%s390 + $0x90] sm:$0xff] %v2385
          %2514 = vst [vmem:[%s390 + $0x98] sm:$0xff] %v2386
          %2515 = vst [vmem:[%s390 + $0xa0] sm:$0xff] %v2387
          %2516 = vst [vmem:[%s390 + $0xa8] sm:$0xff] %v2388
          %2517 = vst [vmem:[%s390 + $0xb0] sm:$0xff] %v2389
          %2518 = vst [vmem:[%s390 + $0xb8] sm:$0xff] %v2390
          %2519 = vst [vmem:[%s390 + $0xc0] sm:$0xff] %v2391
          %2520 = vst [vmem:[%s390 + $0xc8] sm:$0xff] %v2392
          %2521 = vst [vmem:[%s390 + $0xd0] sm:$0xff] %v2393
          %2522 = vst [vmem:[%s390 + $0xd8] sm:$0xff] %v2394
          %2523 = vst [vmem:[%s390 + $0xe0] sm:$0xff] %v2395
          %2524 = vst [vmem:[%s390 + $0xe8] sm:$0xff] %v2396
          %2525 = vst [vmem:[%s390 + $0xf0] sm:$0xff] %v2397
          %2526 = vst [vmem:[%s390 + $0xf8] sm:$0xff] %v2398
          %2527 = vst [vmem:[%s390 + $0x100] sm:$0xff] %v2399
          %2528 = vst [vmem:[%s390 + $0x108] sm:$0xff] %v2400
          %2529 = vst [vmem:[%s390 + $0x110] sm:$0xff] %v2401
          %2530 = vst [vmem:[%s390 + $0x118] sm:$0xff] %v2402
          %2531 = vst [vmem:[%s390 + $0x120] sm:$0xff] %v2403
          %2532 = vst [vmem:[%s390 + $0x128] sm:$0xff] %v2404
          %2533 = vst [vmem:[%s390 + $0x130] sm:$0xff] %v2405
          %2534 = vst [vmem:[%s390 + $0x138] sm:$0xff] %v2406
          %2535 = vst [vmem:[%s390 + $0x140] sm:$0xff] %v2407
          %2536 = vst [vmem:[%s390 + $0x148] sm:$0xff] %v2408
          %2537 = vst [vmem:[%s390 + $0x150] sm:$0xff] %v2409
          %2538 = vst [vmem:[%s390 + $0x158] sm:$0xff] %v2410
          %2539 = vst [vmem:[%s390 + $0x160] sm:$0xff] %v2411
          %2540 = vst [vmem:[%s390 + $0x168] sm:$0xff] %v2412
          %2541 = vst [vmem:[%s390 + $0x170] sm:$0xff] %v2413
          %2542 = vst [vmem:[%s390 + $0x178] sm:$0xff] %v2414
          %2543 = vst [vmem:[%s390 + $0x180] sm:$0xff] %v2415
          %2544 = vst [vmem:[%s390 + $0x188] sm:$0xff] %v2416
          %2545 = vst [vmem:[%s390 + $0x190] sm:$0xff] %v2417
          %2546 = vst [vmem:[%s390 + $0x198] sm:$0xff] %v2418
          %2547 = vst [vmem:[%s390 + $0x1a0] sm:$0xff] %v2419
          %2548 = vst [vmem:[%s390 + $0x1a8] sm:$0xff] %v2420
          %2549 = vst [vmem:[%s390 + $0x1b0] sm:$0xff] %v2421
          %2550 = vst [vmem:[%s390 + $0x1b8] sm:$0xff] %v2422
          %2551 = vst [vmem:[%s390 + $0x1c0] sm:$0xff] %v2423
          %2552 = vst [vmem:[%s390 + $0x1c8] sm:$0xff] %v2424
          %2553 = vst [vmem:[%s390 + $0x1d0] sm:$0xff] %v2425
          %2554 = vst [vmem:[%s390 + $0x1d8] sm:$0xff] %v2426
          %2555 = vst [vmem:[%s390 + $0x1e0] sm:$0xff] %v2427
          %2556 = vst [vmem:[%s390 + $0x1e8] sm:$0xff] %v2428
          %2557 = vst [vmem:[%s390 + $0x1f0] sm:$0xff] %v2429
          %2558 = vst [vmem:[%s390 + $0x1f8] sm:$0xff] %v2430
        $region64: #{tpu_custom_call.1} parent=39 // pred_fallthru
          _
        %p2559 = scmp.ge.s32.totalorder %s33, 2
        // Predicated region
        $region65: #{tpu_custom_call.1} parent=39 // pred_check
          %p2560 = pneg %p2559
        $region66: #{tpu_custom_call.1} parent=39 // pred_check_branch
          %2562 = sbr.rel (%p2560) target = $region68
        $region67: #{tpu_custom_call.1} parent=39 // pred_region
          %v2563 = vpack.c.bf16 %v1025, %v1021
          %v2564 = vpack.c.bf16 %v1027, %v1023
          %v2565 = vpack.c.bf16 %v1035, %v1031
          %v2566 = vpack.c.bf16 %v1037, %v1033
          %v2567 = vpack.c.bf16 %v1045, %v1041
          %v2568 = vpack.c.bf16 %v1047, %v1043
          %v2569 = vpack.c.bf16 %v1055, %v1051
          %v2570 = vpack.c.bf16 %v1057, %v1053
          %v2571 = vpack.c.bf16 %v1065, %v1061
          %v2572 = vpack.c.bf16 %v1067, %v1063
          %v2573 = vpack.c.bf16 %v1075, %v1071
          %v2574 = vpack.c.bf16 %v1077, %v1073
          %v2575 = vpack.c.bf16 %v1085, %v1081
          %v2576 = vpack.c.bf16 %v1087, %v1083
          %v2577 = vpack.c.bf16 %v1095, %v1091
          %v2578 = vpack.c.bf16 %v1097, %v1093
          %v2579 = vpack.c.bf16 %v1105, %v1101
          %v2580 = vpack.c.bf16 %v1107, %v1103
          %v2581 = vpack.c.bf16 %v1115, %v1111
          %v2582 = vpack.c.bf16 %v1117, %v1113
          %v2583 = vpack.c.bf16 %v1125, %v1121
          %v2584 = vpack.c.bf16 %v1127, %v1123
          %v2585 = vpack.c.bf16 %v1135, %v1131
          %v2586 = vpack.c.bf16 %v1137, %v1133
          %v2587 = vpack.c.bf16 %v1145, %v1141
          %v2588 = vpack.c.bf16 %v1147, %v1143
          %v2589 = vpack.c.bf16 %v1155, %v1151
          %v2590 = vpack.c.bf16 %v1157, %v1153
          %v2591 = vpack.c.bf16 %v1165, %v1161
          %v2592 = vpack.c.bf16 %v1167, %v1163
          %v2593 = vpack.c.bf16 %v1175, %v1171
          %v2594 = vpack.c.bf16 %v1177, %v1173
          %v2595 = vpack.c.bf16 %v1185, %v1181
          %v2596 = vpack.c.bf16 %v1187, %v1183
          %v2597 = vpack.c.bf16 %v1195, %v1191
          %v2598 = vpack.c.bf16 %v1197, %v1193
          %v2599 = vpack.c.bf16 %v1205, %v1201
          %v2600 = vpack.c.bf16 %v1207, %v1203
          %v2601 = vpack.c.bf16 %v1215, %v1211
          %v2602 = vpack.c.bf16 %v1217, %v1213
          %v2603 = vpack.c.bf16 %v1225, %v1221
          %v2604 = vpack.c.bf16 %v1227, %v1223
          %v2605 = vpack.c.bf16 %v1235, %v1231
          %v2606 = vpack.c.bf16 %v1237, %v1233
          %v2607 = vpack.c.bf16 %v1245, %v1241
          %v2608 = vpack.c.bf16 %v1247, %v1243
          %v2609 = vpack.c.bf16 %v1255, %v1251
          %v2610 = vpack.c.bf16 %v1257, %v1253
          %v2611 = vpack.c.bf16 %v1265, %v1261
          %v2612 = vpack.c.bf16 %v1267, %v1263
          %v2613 = vpack.c.bf16 %v1275, %v1271
          %v2614 = vpack.c.bf16 %v1277, %v1273
          %v2615 = vpack.c.bf16 %v1285, %v1281
          %v2616 = vpack.c.bf16 %v1287, %v1283
          %v2617 = vpack.c.bf16 %v1295, %v1291
          %v2618 = vpack.c.bf16 %v1297, %v1293
          %v2619 = vpack.c.bf16 %v1305, %v1301
          %v2620 = vpack.c.bf16 %v1307, %v1303
          %v2621 = vpack.c.bf16 %v1315, %v1311
          %v2622 = vpack.c.bf16 %v1317, %v1313
          %v2623 = vpack.c.bf16 %v1325, %v1321
          %v2624 = vpack.c.bf16 %v1327, %v1323
          %v2625 = vpack.c.bf16 %v1335, %v1331
          %v2626 = vpack.c.bf16 %v1337, %v1333
          %v2691 = vunpack.c.l.b16 %v2563
          %v2692 = vunpack.c.l.b16 %v2564
          %v2693 = vunpack.c.h.b16 %v2563
          %v2694 = vunpack.c.h.b16 %v2564
          %v2695 = vunpack.c.l.b16 %v2565
          %v2696 = vunpack.c.l.b16 %v2566
          %v2697 = vunpack.c.h.b16 %v2565
          %v2698 = vunpack.c.h.b16 %v2566
          %v2699 = vunpack.c.l.b16 %v2567
          %v2700 = vunpack.c.l.b16 %v2568
          %v2701 = vunpack.c.h.b16 %v2567
          %v2702 = vunpack.c.h.b16 %v2568
          %v2703 = vunpack.c.l.b16 %v2569
          %v2704 = vunpack.c.l.b16 %v2570
          %v2705 = vunpack.c.h.b16 %v2569
          %v2706 = vunpack.c.h.b16 %v2570
          %v2707 = vunpack.c.l.b16 %v2571
          %v2708 = vunpack.c.l.b16 %v2572
          %v2709 = vunpack.c.h.b16 %v2571
          %v2710 = vunpack.c.h.b16 %v2572
          %v2711 = vunpack.c.l.b16 %v2573
          %v2712 = vunpack.c.l.b16 %v2574
          %v2713 = vunpack.c.h.b16 %v2573
          %v2714 = vunpack.c.h.b16 %v2574
          %v2715 = vunpack.c.l.b16 %v2575
          %v2716 = vunpack.c.l.b16 %v2576
          %v2717 = vunpack.c.h.b16 %v2575
          %v2718 = vunpack.c.h.b16 %v2576
          %v2719 = vunpack.c.l.b16 %v2577
          %v2720 = vunpack.c.l.b16 %v2578
          %v2721 = vunpack.c.h.b16 %v2577
          %v2722 = vunpack.c.h.b16 %v2578
          %v2723 = vunpack.c.l.b16 %v2579
          %v2724 = vunpack.c.l.b16 %v2580
          %v2725 = vunpack.c.h.b16 %v2579
          %v2726 = vunpack.c.h.b16 %v2580
          %v2727 = vunpack.c.l.b16 %v2581
          %v2728 = vunpack.c.l.b16 %v2582
          %v2729 = vunpack.c.h.b16 %v2581
          %v2730 = vunpack.c.h.b16 %v2582
          %v2731 = vunpack.c.l.b16 %v2583
          %v2732 = vunpack.c.l.b16 %v2584
          %v2733 = vunpack.c.h.b16 %v2583
          %v2734 = vunpack.c.h.b16 %v2584
          %v2735 = vunpack.c.l.b16 %v2585
          %v2736 = vunpack.c.l.b16 %v2586
          %v2737 = vunpack.c.h.b16 %v2585
          %v2738 = vunpack.c.h.b16 %v2586
          %v2739 = vunpack.c.l.b16 %v2587
          %v2740 = vunpack.c.l.b16 %v2588
          %v2741 = vunpack.c.h.b16 %v2587
          %v2742 = vunpack.c.h.b16 %v2588
          %v2743 = vunpack.c.l.b16 %v2589
          %v2744 = vunpack.c.l.b16 %v2590
          %v2745 = vunpack.c.h.b16 %v2589
          %v2746 = vunpack.c.h.b16 %v2590
          %v2747 = vunpack.c.l.b16 %v2591
          %v2748 = vunpack.c.l.b16 %v2592
          %v2749 = vunpack.c.h.b16 %v2591
          %v2750 = vunpack.c.h.b16 %v2592
          %v2751 = vunpack.c.l.b16 %v2593
          %v2752 = vunpack.c.l.b16 %v2594
          %v2753 = vunpack.c.h.b16 %v2593
          %v2754 = vunpack.c.h.b16 %v2594
          %v2755 = vunpack.c.l.b16 %v2595
          %v2756 = vunpack.c.l.b16 %v2596
          %v2757 = vunpack.c.h.b16 %v2595
          %v2758 = vunpack.c.h.b16 %v2596
          %v2759 = vunpack.c.l.b16 %v2597
          %v2760 = vunpack.c.l.b16 %v2598
          %v2761 = vunpack.c.h.b16 %v2597
          %v2762 = vunpack.c.h.b16 %v2598
          %v2763 = vunpack.c.l.b16 %v2599
          %v2764 = vunpack.c.l.b16 %v2600
          %v2765 = vunpack.c.h.b16 %v2599
          %v2766 = vunpack.c.h.b16 %v2600
          %v2767 = vunpack.c.l.b16 %v2601
          %v2768 = vunpack.c.l.b16 %v2602
          %v2769 = vunpack.c.h.b16 %v2601
          %v2770 = vunpack.c.h.b16 %v2602
          %v2771 = vunpack.c.l.b16 %v2603
          %v2772 = vunpack.c.l.b16 %v2604
          %v2773 = vunpack.c.h.b16 %v2603
          %v2774 = vunpack.c.h.b16 %v2604
          %v2775 = vunpack.c.l.b16 %v2605
          %v2776 = vunpack.c.l.b16 %v2606
          %v2777 = vunpack.c.h.b16 %v2605
          %v2778 = vunpack.c.h.b16 %v2606
          %v2779 = vunpack.c.l.b16 %v2607
          %v2780 = vunpack.c.l.b16 %v2608
          %v2781 = vunpack.c.h.b16 %v2607
          %v2782 = vunpack.c.h.b16 %v2608
          %v2783 = vunpack.c.l.b16 %v2609
          %v2784 = vunpack.c.l.b16 %v2610
          %v2785 = vunpack.c.h.b16 %v2609
          %v2786 = vunpack.c.h.b16 %v2610
          %v2787 = vunpack.c.l.b16 %v2611
          %v2788 = vunpack.c.l.b16 %v2612
          %v2789 = vunpack.c.h.b16 %v2611
          %v2790 = vunpack.c.h.b16 %v2612
          %v2791 = vunpack.c.l.b16 %v2613
          %v2792 = vunpack.c.l.b16 %v2614
          %v2793 = vunpack.c.h.b16 %v2613
          %v2794 = vunpack.c.h.b16 %v2614
          %v2795 = vunpack.c.l.b16 %v2615
          %v2796 = vunpack.c.l.b16 %v2616
          %v2797 = vunpack.c.h.b16 %v2615
          %v2798 = vunpack.c.h.b16 %v2616
          %v2799 = vunpack.c.l.b16 %v2617
          %v2800 = vunpack.c.l.b16 %v2618
          %v2801 = vunpack.c.h.b16 %v2617
          %v2802 = vunpack.c.h.b16 %v2618
          %v2803 = vunpack.c.l.b16 %v2619
          %v2804 = vunpack.c.l.b16 %v2620
          %v2805 = vunpack.c.h.b16 %v2619
          %v2806 = vunpack.c.h.b16 %v2620
          %v2807 = vunpack.c.l.b16 %v2621
          %v2808 = vunpack.c.l.b16 %v2622
          %v2809 = vunpack.c.h.b16 %v2621
          %v2810 = vunpack.c.h.b16 %v2622
          %v2811 = vunpack.c.l.b16 %v2623
          %v2812 = vunpack.c.l.b16 %v2624
          %v2813 = vunpack.c.h.b16 %v2623
          %v2814 = vunpack.c.h.b16 %v2624
          %v2815 = vunpack.c.l.b16 %v2625
          %v2816 = vunpack.c.l.b16 %v2626
          %v2817 = vunpack.c.h.b16 %v2625
          %v2818 = vunpack.c.h.b16 %v2626
          %v2819 = vpack.c.b16 %v2692, %v2691
          %v2820 = vpack.c.b16 %v2694, %v2693
          %v2821 = vpack.c.b16 %v2696, %v2695
          %v2822 = vpack.c.b16 %v2698, %v2697
          %v2823 = vpack.c.b16 %v2700, %v2699
          %v2824 = vpack.c.b16 %v2702, %v2701
          %v2825 = vpack.c.b16 %v2704, %v2703
          %v2826 = vpack.c.b16 %v2706, %v2705
          %v2827 = vpack.c.b16 %v2708, %v2707
          %v2828 = vpack.c.b16 %v2710, %v2709
          %v2829 = vpack.c.b16 %v2712, %v2711
          %v2830 = vpack.c.b16 %v2714, %v2713
          %v2831 = vpack.c.b16 %v2716, %v2715
          %v2832 = vpack.c.b16 %v2718, %v2717
          %v2833 = vpack.c.b16 %v2720, %v2719
          %v2834 = vpack.c.b16 %v2722, %v2721
          %v2835 = vpack.c.b16 %v2724, %v2723
          %v2836 = vpack.c.b16 %v2726, %v2725
          %v2837 = vpack.c.b16 %v2728, %v2727
          %v2838 = vpack.c.b16 %v2730, %v2729
          %v2839 = vpack.c.b16 %v2732, %v2731
          %v2840 = vpack.c.b16 %v2734, %v2733
          %v2841 = vpack.c.b16 %v2736, %v2735
          %v2842 = vpack.c.b16 %v2738, %v2737
          %v2843 = vpack.c.b16 %v2740, %v2739
          %v2844 = vpack.c.b16 %v2742, %v2741
          %v2845 = vpack.c.b16 %v2744, %v2743
          %v2846 = vpack.c.b16 %v2746, %v2745
          %v2847 = vpack.c.b16 %v2748, %v2747
          %v2848 = vpack.c.b16 %v2750, %v2749
          %v2849 = vpack.c.b16 %v2752, %v2751
          %v2850 = vpack.c.b16 %v2754, %v2753
          %v2851 = vpack.c.b16 %v2756, %v2755
          %v2852 = vpack.c.b16 %v2758, %v2757
          %v2853 = vpack.c.b16 %v2760, %v2759
          %v2854 = vpack.c.b16 %v2762, %v2761
          %v2855 = vpack.c.b16 %v2764, %v2763
          %v2856 = vpack.c.b16 %v2766, %v2765
          %v2857 = vpack.c.b16 %v2768, %v2767
          %v2858 = vpack.c.b16 %v2770, %v2769
          %v2859 = vpack.c.b16 %v2772, %v2771
          %v2860 = vpack.c.b16 %v2774, %v2773
          %v2861 = vpack.c.b16 %v2776, %v2775
          %v2862 = vpack.c.b16 %v2778, %v2777
          %v2863 = vpack.c.b16 %v2780, %v2779
          %v2864 = vpack.c.b16 %v2782, %v2781
          %v2865 = vpack.c.b16 %v2784, %v2783
          %v2866 = vpack.c.b16 %v2786, %v2785
          %v2867 = vpack.c.b16 %v2788, %v2787
          %v2868 = vpack.c.b16 %v2790, %v2789
          %v2869 = vpack.c.b16 %v2792, %v2791
          %v2870 = vpack.c.b16 %v2794, %v2793
          %v2871 = vpack.c.b16 %v2796, %v2795
          %v2872 = vpack.c.b16 %v2798, %v2797
          %v2873 = vpack.c.b16 %v2800, %v2799
          %v2874 = vpack.c.b16 %v2802, %v2801
          %v2875 = vpack.c.b16 %v2804, %v2803
          %v2876 = vpack.c.b16 %v2806, %v2805
          %v2877 = vpack.c.b16 %v2808, %v2807
          %v2878 = vpack.c.b16 %v2810, %v2809
          %v2879 = vpack.c.b16 %v2812, %v2811
          %v2880 = vpack.c.b16 %v2814, %v2813
          %v2881 = vpack.c.b16 %v2816, %v2815
          %v2882 = vpack.c.b16 %v2818, %v2817
          %2947 = vst [vmem:[%s390] sm:$0xff] %v2819
          %2948 = vst [vmem:[%s390 + $0x8] sm:$0xff] %v2820
          %2949 = vst [vmem:[%s390 + $0x10] sm:$0xff] %v2821
          %2950 = vst [vmem:[%s390 + $0x18] sm:$0xff] %v2822
          %2951 = vst [vmem:[%s390 + $0x20] sm:$0xff] %v2823
          %2952 = vst [vmem:[%s390 + $0x28] sm:$0xff] %v2824
          %2953 = vst [vmem:[%s390 + $0x30] sm:$0xff] %v2825
          %2954 = vst [vmem:[%s390 + $0x38] sm:$0xff] %v2826
          %2955 = vst [vmem:[%s390 + $0x40] sm:$0xff] %v2827
          %2956 = vst [vmem:[%s390 + $0x48] sm:$0xff] %v2828
          %2957 = vst [vmem:[%s390 + $0x50] sm:$0xff] %v2829
          %2958 = vst [vmem:[%s390 + $0x58] sm:$0xff] %v2830
          %2959 = vst [vmem:[%s390 + $0x60] sm:$0xff] %v2831
          %2960 = vst [vmem:[%s390 + $0x68] sm:$0xff] %v2832
          %2961 = vst [vmem:[%s390 + $0x70] sm:$0xff] %v2833
          %2962 = vst [vmem:[%s390 + $0x78] sm:$0xff] %v2834
          %2963 = vst [vmem:[%s390 + $0x80] sm:$0xff] %v2835
          %2964 = vst [vmem:[%s390 + $0x88] sm:$0xff] %v2836
          %2965 = vst [vmem:[%s390 + $0x90] sm:$0xff] %v2837
          %2966 = vst [vmem:[%s390 + $0x98] sm:$0xff] %v2838
          %2967 = vst [vmem:[%s390 + $0xa0] sm:$0xff] %v2839
          %2968 = vst [vmem:[%s390 + $0xa8] sm:$0xff] %v2840
          %2969 = vst [vmem:[%s390 + $0xb0] sm:$0xff] %v2841
          %2970 = vst [vmem:[%s390 + $0xb8] sm:$0xff] %v2842
          %2971 = vst [vmem:[%s390 + $0xc0] sm:$0xff] %v2843
          %2972 = vst [vmem:[%s390 + $0xc8] sm:$0xff] %v2844
          %2973 = vst [vmem:[%s390 + $0xd0] sm:$0xff] %v2845
          %2974 = vst [vmem:[%s390 + $0xd8] sm:$0xff] %v2846
          %2975 = vst [vmem:[%s390 + $0xe0] sm:$0xff] %v2847
          %2976 = vst [vmem:[%s390 + $0xe8] sm:$0xff] %v2848
          %2977 = vst [vmem:[%s390 + $0xf0] sm:$0xff] %v2849
          %2978 = vst [vmem:[%s390 + $0xf8] sm:$0xff] %v2850
          %2979 = vst [vmem:[%s390 + $0x100] sm:$0xff] %v2851
          %2980 = vst [vmem:[%s390 + $0x108] sm:$0xff] %v2852
          %2981 = vst [vmem:[%s390 + $0x110] sm:$0xff] %v2853
          %2982 = vst [vmem:[%s390 + $0x118] sm:$0xff] %v2854
          %2983 = vst [vmem:[%s390 + $0x120] sm:$0xff] %v2855
          %2984 = vst [vmem:[%s390 + $0x128] sm:$0xff] %v2856
          %2985 = vst [vmem:[%s390 + $0x130] sm:$0xff] %v2857
          %2986 = vst [vmem:[%s390 + $0x138] sm:$0xff] %v2858
          %2987 = vst [vmem:[%s390 + $0x140] sm:$0xff] %v2859
          %2988 = vst [vmem:[%s390 + $0x148] sm:$0xff] %v2860
          %2989 = vst [vmem:[%s390 + $0x150] sm:$0xff] %v2861
          %2990 = vst [vmem:[%s390 + $0x158] sm:$0xff] %v2862
          %2991 = vst [vmem:[%s390 + $0x160] sm:$0xff] %v2863
          %2992 = vst [vmem:[%s390 + $0x168] sm:$0xff] %v2864
          %2993 = vst [vmem:[%s390 + $0x170] sm:$0xff] %v2865
          %2994 = vst [vmem:[%s390 + $0x178] sm:$0xff] %v2866
          %2995 = vst [vmem:[%s390 + $0x180] sm:$0xff] %v2867
          %2996 = vst [vmem:[%s390 + $0x188] sm:$0xff] %v2868
          %2997 = vst [vmem:[%s390 + $0x190] sm:$0xff] %v2869
          %2998 = vst [vmem:[%s390 + $0x198] sm:$0xff] %v2870
          %2999 = vst [vmem:[%s390 + $0x1a0] sm:$0xff] %v2871
          %3000 = vst [vmem:[%s390 + $0x1a8] sm:$0xff] %v2872
          %3001 = vst [vmem:[%s390 + $0x1b0] sm:$0xff] %v2873
          %3002 = vst [vmem:[%s390 + $0x1b8] sm:$0xff] %v2874
          %3003 = vst [vmem:[%s390 + $0x1c0] sm:$0xff] %v2875
          %3004 = vst [vmem:[%s390 + $0x1c8] sm:$0xff] %v2876
          %3005 = vst [vmem:[%s390 + $0x1d0] sm:$0xff] %v2877
          %3006 = vst [vmem:[%s390 + $0x1d8] sm:$0xff] %v2878
          %3007 = vst [vmem:[%s390 + $0x1e0] sm:$0xff] %v2879
          %3008 = vst [vmem:[%s390 + $0x1e8] sm:$0xff] %v2880
          %3009 = vst [vmem:[%s390 + $0x1f0] sm:$0xff] %v2881
          %3010 = vst [vmem:[%s390 + $0x1f8] sm:$0xff] %v2882
        $region68: #{tpu_custom_call.1} parent=39 // pred_fallthru
          _
        %s3011 = sand.u32 %s189, 1
        %s3012 = scalar_lea.sflag [#allocation4], %s3011
        %s3013 = sand.u32 %s189, 1
        %s3014 = smul.addr %s3013, 512
        %s3015 = scalar_lea.vmem [#allocation11], %s3014
        // Predicated region
        $region69: #{tpu_custom_call.1} parent=39 // pred_check
          %p3016 = pneg %p199
        $region70: #{tpu_custom_call.1} parent=39 // pred_check_branch
          %3018 = sbr.rel (%p3016) target = $region72
        $region71: #{tpu_custom_call.1} parent=39 // pred_region
          %s3019 = smul.u32 64, %s32
          %s3020 = smul.u32 2, %s33
          %s3022 = ssub.s32 8192, 8192
          %3023 = vsyncadd %s3012, %s3022
          %s3024 = smul.addr %s3019, 6
          %s3025 = sadd.s32 %s3020, %s3024
          %s3026 = smul.addr %s31, 384
          %s3027 = sadd.s32 %s3025, %s3026
          %s3028 = smul.addr %s3027, 64
          %s3029 = scalar_lea.hbm %s5, %s3028
          %s3030 = sshll.u32 %s3015, 4
          %s3031 = int_to_ptr.vmem [resolvable:$true] %s3030
          %3036 = dma.vmem_to_hbm [thread:$0]  %s3031, 8192, %s3029, %s3012, 128, 384, 8
        $region72: #{tpu_custom_call.1} parent=39 // pred_fallthru
          _
      $region40: #{tpu_custom_call.1} parent=5 // pred_fallthru
        _
      %p3037 = scmp.le.s32.totalorder 2, %s21
      // Predicated region
      $region73: #{tpu_custom_call.1} parent=5 // pred_check
        %p3038 = pneg %p3037
      $region74: #{tpu_custom_call.1} parent=5 // pred_check_branch
        %3040 = sbr.rel (%p3038) target = $region76
      $region75: #{tpu_custom_call.1} parent=5 // pred_region
        %s3041 = ssub.s32 %s21, 2
        // Predicated region
        $region77: #{tpu_custom_call.1} parent=75 // pred_check
          %p3042 = pneg %p205
        $region78: #{tpu_custom_call.1} parent=75 // pred_check_branch
          %3044 = sbr.rel (%p3042) target = $region80
        $region79: #{tpu_custom_call.1} parent=75 // pred_region
          %s3045 = sand.u32 %s190, 1
          %s3046 = scalar_lea.sflag [#allocation4], %s3045
          %s3047 = sand.u32 %s190, 1
          %s3048 = smul.addr %s3047, 512
          %s3049 = scalar_lea.vmem [#allocation11], %s3048
          %3050 = dma.done %s3046, 8192
        $region80: #{tpu_custom_call.1} parent=75 // pred_fallthru
          _
      $region76: #{tpu_custom_call.1} parent=5 // pred_fallthru
        _
    $region6: #{tpu_custom_call.1} parent=1 // loop_footer
      %s25 = sadd.s32 1, %s21
    $region7: #{tpu_custom_call.1} parent=1 // loop_footer_branch
      %20 = sbr.rel target = $region3
    $region8: #{tpu_custom_call.1} parent=1 // loop_exit
      _
    %3051 = vsyncpa [#allocation3], 1
    %s3052 = scalar_lea.sflag [#allocation3], 1
    %3053 = vsyncpa %s3052, 1
    %3054 = vsyncpa [#allocation6], 1
    %s3055 = scalar_lea.sflag [#allocation6], 1
    %3056 = vsyncpa %s3055, 1
    %3057 = vsyncpa [#allocation9], 1
    %3058 = vsyncpa [#allocation4], 1
    %s3059 = scalar_lea.sflag [#allocation4], 1
    %3060 = vsyncpa %s3059, 1

</llo_original>
